<compile_context>
chip_gen: v6e
topology: v6e:2x2x1
jax: 0.10.0
libtpu: 0.0.40
codegen_flags: <defaults>
</compile_context>

<pallas_src>
import functools

import jax
import jax.numpy as jnp
from jax import lax
from jax.experimental import pallas as pl
from jax.experimental.pallas import tpu as pltpu

_SQRT_HALF = 0.7071067811865476
_TAPS = tuple((dy, dx) for dy in (-1, 0, 1) for dx in (-1, 0, 1))


def _gelu_erf(x):
    # Exact GELU (matches torch.nn.functional.gelu default, approximate='none').
    return 0.5 * x * (1.0 + lax.erf(x * _SQRT_HALF))


def _gelu_tanh(x):
    # tanh approximation (EUP path); matches torch gelu(approximate='tanh').
    c = 0.7978845608028654  # sqrt(2/pi)
    return 0.5 * x * (1.0 + jnp.tanh(c * (x + 0.044715 * x * x * x)))


def _block_kernel(x_ref, m_ref, w1_ref, b1_ref, w2_ref, b2_ref, w3_ref, b3_ref,
                  w4_ref, b4_ref, *rest, residual, downsample, n_img, S, So, W,
                  mxu_dtype, approx_gelu):
    if downsample:
        p_ref, o_ref, patch_ref = rest
    else:
        o_ref, patch_ref = rest
    Cmid = w1_ref.shape[0]
    Stot = n_img * S
    gelu = _gelu_tanh if approx_gelu else _gelu_erf

    x = x_ref[0]                      # (Cin, Stot) f32, lane-dense
    tap_mask = m_ref[...]             # (9, Stot) f32 {0,1}, built by the wrapper

    def mm(w_ref, act, b_ref):
        # MXU matmul: bf16 (or f32) operands, f32 accumulation, f32 bias.
        return jnp.dot(w_ref[...], act.astype(mxu_dtype),
                       preferred_element_type=jnp.float32) + b_ref[...]

    def conv3x3(hg, w_ref, b_ref):
        # im2col: 9 rolled+masked taps written side-by-side into a VMEM slab
        # (mxu_dtype), then ONE (Cmid, 9*Cmid) @ (9*Cmid, Stot) MXU matmul.
        # pltpu.roll uses the XLU slot; masking is one broadcast multiply.
        for t, (dy, dx) in enumerate(_TAPS):
            if dy == 0 and dx == 0:
                v = hg
            else:
                d = dy * W + dx
                v = pltpu.roll(hg, shift=(-d) % Stot, axis=1)
                v = v * tap_mask[t:t + 1, :]
            patch_ref[t * Cmid:(t + 1) * Cmid, :] = v.astype(patch_ref.dtype)
        return jnp.dot(w_ref[...], patch_ref[...],
                       preferred_element_type=jnp.float32) + b_ref[...]

    h = mm(w1_ref, gelu(x), b1_ref)           # gelu -> conv1 (1x1)
    h = conv3x3(gelu(h), w2_ref, b2_ref)      # gelu -> conv2 (3x3, pad 1)
    h = conv3x3(gelu(h), w3_ref, b3_ref)      # gelu -> conv3 (3x3, pad 1)
    y = mm(w4_ref, gelu(h), b4_ref)           # gelu -> conv4 (1x1)
    if residual:
        y = y + x                             # residual in f32
    if downsample:
        # Fused AvgPool2d(2): per-image (S, So) 0/0.25 matmul (MXU-dtype
        # operands, f32 accumulation).  Per-image keeps the matrix O(S*So)
        # instead of an O((B*S)^2) block-diagonal slab.
        for b in range(n_img):
            seg = y[:, b * S:(b + 1) * S].astype(mxu_dtype)
            o_ref[0, :, b * So:(b + 1) * So] = jnp.dot(
                seg, p_ref[...], preferred_element_type=jnp.float32
            ).astype(o_ref.dtype)
    else:
        o_ref[0] = y.astype(o_ref.dtype)


@functools.partial(jax.jit, static_argnames=("residual", "downsample", "mxu_bf16",
                                              "approx_gelu", "images_per_step"))
def block_forward(x_nchw, params, residual=True, downsample=False, mxu_bf16=True,
                  approx_gelu=False, images_per_step=None):
    w1, b1, w2, b2, w3, b3, w4, b4 = params
    N, Cin, H, W = x_nchw.shape
    Cmid = w1.shape[0]
    Cout = w4.shape[0]
    if residual and Cin != Cout:
        raise ValueError("residual=True requires in_ch == out_ch")
    S = H * W

    # --- images per grid step (lane batching) -------------------------------
    if images_per_step is None:
        B = 1
        for cand in range(N, 0, -1):           # largest divisor with <=4096 lanes
            if N % cand == 0 and cand * S <= 4096:
                B = cand
                break
    else:
        B = int(images_per_step)
    if N % B != 0:
        raise ValueError("images_per_step must divide the batch size")
    G = N // B
    Stot = B * S
    mxu_dtype = jnp.bfloat16 if mxu_bf16 else jnp.float32

    # NCHW -> (G, C, B*H*W): images concatenated along the lane axis.
    x = x_nchw.astype(jnp.float32).reshape(G, B, Cin, S)
    x = jnp.transpose(x, (0, 2, 1, 3)).reshape(G, Cin, Stot)

    # Per-pixel tap-validity masks (one row per 3x3 tap), built once outside
    # the kernel.  Roll wrap-around across image boundaries lands exactly on
    # masked pixels, so lane batching stays correct.
    s = jnp.arange(S, dtype=jnp.int32)
    ys, xs = s // W, s % W
    rows = []
    for dy in (-1, 0, 1):
        for dx in (-1, 0, 1):
            m = jnp.ones((S,), jnp.float32)
            if dy == -1:
                m = m * (ys >= 1).astype(jnp.float32)
            if dy == 1:
                m = m * (ys < H - 1).astype(jnp.float32)
            if dx == -1:
                m = m * (xs >= 1).astype(jnp.float32)
            if dx == 1:
                m = m * (xs < W - 1).astype(jnp.float32)
            rows.append(m)
    tap_mask = jnp.tile(jnp.stack(rows, 0), (1, B))          # (9, B*S)

    # Kernel-side weight layouts (MXU operands, bf16 by default):
    #   1x1 convs:        (Cout, Cin)
    #   3x3 convs im2col: (Cout, 9*Cin), columns ordered (kh, kw, ci)
    w1k = w1.astype(mxu_dtype)
    w2k = jnp.transpose(w2, (0, 2, 3, 1)).reshape(Cmid, 9 * Cmid).astype(mxu_dtype)
    w3k = jnp.transpose(w3, (0, 2, 3, 1)).reshape(Cmid, 9 * Cmid).astype(mxu_dtype)
    w4k = w4.astype(mxu_dtype)
    b1k = b1.reshape(Cmid, 1).astype(jnp.float32)
    b2k = b2.reshape(Cmid, 1).astype(jnp.float32)
    b3k = b3.reshape(Cmid, 1).astype(jnp.float32)
    b4k = b4.reshape(Cout, 1).astype(jnp.float32)

    if downsample:
        Ho, Wo = H // 2, W // 2
        So = Ho * Wo
        # AvgPool2d(2) as a per-image (S, So) 0/0.25 matrix (floor behavior for
        # odd H/W, matching PyTorch), stored in the MXU dtype.
        idx = jnp.arange(S)
        yy, xx = idx // W, idx % W
        dest = (yy // 2) * Wo + (xx // 2)
        valid = (yy < 2 * Ho) & (xx < 2 * Wo)
        pool = ((dest[:, None] == jnp.arange(So)[None, :]) & valid[:, None])
        pool = (pool.astype(jnp.float32) * 0.25).astype(mxu_dtype)
    else:
        Ho, Wo, So = H, W, S

    const = lambda n: (0, 0)
    inputs = [x, tap_mask, w1k, b1k, w2k, b2k, w3k, b3k, w4k, b4k]
    in_specs = [
        pl.BlockSpec((1, Cin, Stot), lambda n: (n, 0, 0)),
        pl.BlockSpec((9, Stot), const),
        pl.BlockSpec((Cmid, Cin), const),
        pl.BlockSpec((Cmid, 1), const),
        pl.BlockSpec((Cmid, 9 * Cmid), const),
        pl.BlockSpec((Cmid, 1), const),
        pl.BlockSpec((Cmid, 9 * Cmid), const),
        pl.BlockSpec((Cmid, 1), const),
        pl.BlockSpec((Cout, Cmid), const),
        pl.BlockSpec((Cout, 1), const),
    ]
    if downsample:
        inputs.append(pool)
        in_specs.append(pl.BlockSpec((S, So), const))

    kernel = functools.partial(
        _block_kernel, residual=residual, downsample=downsample, n_img=B,
        S=S, So=So, W=W, mxu_dtype=mxu_dtype, approx_gelu=approx_gelu)

    out = pl.pallas_call(
        kernel,
        out_shape=jax.ShapeDtypeStruct((G, Cout, B * So), jnp.float32),
        grid_spec=pltpu.PrefetchScalarGridSpec(
            num_scalar_prefetch=0,
            grid=(G,),
            in_specs=in_specs,
            out_specs=pl.BlockSpec((1, Cout, B * So), lambda n: (n, 0, 0)),
            scratch_shapes=[pltpu.VMEM((9 * Cmid, Stot), mxu_dtype)],
        ),
        compiler_params=pltpu.CompilerParams(
            dimension_semantics=("parallel",),
            vmem_limit_bytes=48 * 1024 * 1024,
        ),
    )(*inputs)

    # (G, Cout, B*So) -> (N, Cout, Ho, Wo)
    out = out.reshape(G, Cout, B, So).transpose(0, 2, 1, 3)
    return out.reshape(N, Cout, Ho, Wo)


def block_forward_ref(x_nchw, params, residual=True, downsample=False,
                      approx_gelu=False):
    """Pure-JAX reference (lax convs) used only for correctness checking."""
    w1, b1, w2, b2, w3, b3, w4, b4 = params
    gelu = _gelu_tanh if approx_gelu else (lambda v: 0.5 * v * (1.0 + lax.erf(v * _SQRT_HALF)))
    x = jnp.transpose(x_nchw, (0, 2, 3, 1)).astype(jnp.float32)   # NHWC
    dn = ("NHWC", "HWIO", "NHWC")

    def conv(h, w_oihw, b, pad):
        w = jnp.transpose(w_oihw, (2, 3, 1, 0))                   # OIHW -> HWIO
        return lax.conv_general_dilated(h, w, (1, 1), pad, dimension_numbers=dn,
                                        precision=lax.Precision.HIGHEST) + b

    h = gelu(x)
    h = conv(h, w1[:, :, None, None], b1, "VALID")
    h = conv(gelu(h), w2, b2, "SAME")
    h = conv(gelu(h), w3, b3, "SAME")
    h = conv(gelu(h), w4[:, :, None, None], b4, "VALID")
    if residual:
        h = h + x
    if downsample:
        n, hh, ww, c = h.shape
        ho, wo = hh // 2, ww // 2
        h = h[:, :2 * ho, :2 * wo, :].reshape(n, ho, 2, wo, 2, c).mean(axis=(2, 4))
    return jnp.transpose(h, (0, 3, 1, 2))


def init_params(key, in_ch, mid_ch, out_ch, zero_last=False):
    """Deterministic PyTorch-Conv2d-style init; PyTorch weight layouts."""
    ks = jax.random.split(key, 8)

    def u(k, shape, fan_in):
        bound = 1.0 / (fan_in ** 0.5)
        return jax.random.uniform(k, shape, jnp.float32, -bound, bound)

    w1 = u(ks[0], (mid_ch, in_ch), in_ch)               # Conv2d(in,mid,1)  (O,I)
    b1 = u(ks[1], (mid_ch,), in_ch)
    w2 = u(ks[2], (mid_ch, mid_ch, 3, 3), 9 * mid_ch)   # (O,I,kh,kw)
    b2 = u(ks[3], (mid_ch,), 9 * mid_ch)
    w3 = u(ks[4], (mid_ch, mid_ch, 3, 3), 9 * mid_ch)
    b3 = u(ks[5], (mid_ch,), 9 * mid_ch)
    w4 = u(ks[6], (out_ch, mid_ch), mid_ch)             # Conv2d(mid,out,1)
    b4 = u(ks[7], (out_ch,), mid_ch)
    if zero_last:
        w4 = jnp.zeros_like(w4)
        b4 = jnp.zeros_like(b4)
    return (w1, b1, w2, b2, w3, b3, w4, b4)


if __name__ == "__main__":
    key = jax.random.PRNGKey(0)
    kx, kp = jax.random.split(key)

    N, Cin, Cmid, Cout, H, W = 2, 4, 8, 4, 16, 16
    x = jax.random.normal(kx, (N, Cin, H, W), jnp.float32)   # NCHW, like PyTorch
    params = init_params(kp, Cin, Cmid, Cout, zero_last=False)

    ref = block_forward_ref(x, params, residual=True, downsample=False)

    # 1) Exact f32-MXU path (semantics check vs PyTorch-equivalent reference).
    out = block_forward(x, params, residual=True, downsample=False, mxu_bf16=False)
    jax.block_until_ready(out)
    assert out.shape == (N, Cout, H, W), out.shape
    err = float(jnp.max(jnp.abs(out - ref)))
    assert err < 1e-3, f"f32 path max abs err {err}"

    # 2) Default bf16-MXU path (bf16 operands, f32 accumulation).
    out_bf = block_forward(x, params, residual=True, downsample=False, mxu_bf16=True)
    jax.block_until_ready(out_bf)
    err_bf = float(jnp.max(jnp.abs(out_bf - ref)))
    assert err_bf < 5e-2, f"bf16 path max abs err {err_bf}"

    # 3) Fused AvgPool2d(2) + bf16 MXU + tanh-approx GELU (EUP path).
    out_ds = block_forward(x, params, residual=True, downsample=True,
                           mxu_bf16=True, approx_gelu=True)
    jax.block_until_ready(out_ds)
    ref_ds = block_forward_ref(x, params, residual=True, downsample=True,
                               approx_gelu=True)
    assert out_ds.shape == (N, Cout, H // 2, W // 2), out_ds.shape
    err_ds = float(jnp.max(jnp.abs(out_ds - ref_ds)))
    assert err_ds < 5e-2, f"downsample path max abs err {err_ds}"

    print("KERNEL_OK")
</pallas_src>

<mosaic_0001>
module attributes {stable_mosaic.version = 11 : i64} {
  func.func @_block_kernel(%arg0: i32, %arg1: memref<1x4x512xf32, #tpu.memory_space<vmem>>, %arg2: memref<9x512xf32, #tpu.memory_space<vmem>>, %arg3: memref<8x4xf32, #tpu.memory_space<vmem>>, %arg4: memref<8x1xf32, #tpu.memory_space<vmem>>, %arg5: memref<8x72xf32, #tpu.memory_space<vmem>>, %arg6: memref<8x1xf32, #tpu.memory_space<vmem>>, %arg7: memref<8x72xf32, #tpu.memory_space<vmem>>, %arg8: memref<8x1xf32, #tpu.memory_space<vmem>>, %arg9: memref<4x8xf32, #tpu.memory_space<vmem>>, %arg10: memref<4x1xf32, #tpu.memory_space<vmem>>, %arg11: memref<1x4x512xf32, #tpu.memory_space<vmem>>, %arg12: memref<72x512xf32, #tpu.memory_space<vmem>>) attributes {dimension_semantics = [#tpu.dimension_semantics<parallel>], iteration_bounds = array<i64: 1>, scalar_prefetch = 0 : i64, scratch_operands = 1 : i64, tpu.core_type = #tpu.core_type<tc>, window_params = [{transform_indices = @transform_0, window_bounds = array<i64: 1, 4, 512>}, {pipeline_mode = #tpu.pipeline_mode<synchronous>, transform_indices = @transform_1, window_bounds = array<i64: 9, 512>}, {pipeline_mode = #tpu.pipeline_mode<synchronous>, transform_indices = @transform_2, window_bounds = array<i64: 8, 4>}, {pipeline_mode = #tpu.pipeline_mode<synchronous>, transform_indices = @transform_3, window_bounds = array<i64: 8, 1>}, {pipeline_mode = #tpu.pipeline_mode<synchronous>, transform_indices = @transform_4, window_bounds = array<i64: 8, 72>}, {pipeline_mode = #tpu.pipeline_mode<synchronous>, transform_indices = @transform_5, window_bounds = array<i64: 8, 1>}, {pipeline_mode = #tpu.pipeline_mode<synchronous>, transform_indices = @transform_6, window_bounds = array<i64: 8, 72>}, {pipeline_mode = #tpu.pipeline_mode<synchronous>, transform_indices = @transform_7, window_bounds = array<i64: 8, 1>}, {pipeline_mode = #tpu.pipeline_mode<synchronous>, transform_indices = @transform_8, window_bounds = array<i64: 4, 8>}, {pipeline_mode = #tpu.pipeline_mode<synchronous>, transform_indices = @transform_9, window_bounds = array<i64: 4, 1>}, {transform_indices = @transform_10, window_bounds = array<i64: 1, 4, 512>}]} {
    %c0 = arith.constant 0 : index
    %c0_0 = arith.constant 0 : index
    %c0_1 = arith.constant 0 : index
    %0 = vector.load %arg1[%c0, %c0_0, %c0_1] : memref<1x4x512xf32, #tpu.memory_space<vmem>>, vector<1x4x512xf32>
    %1 = vector.shape_cast %0 : vector<1x4x512xf32> to vector<4x512xf32>
    %c0_2 = arith.constant 0 : index
    %c0_3 = arith.constant 0 : index
    %2 = vector.load %arg2[%c0_2, %c0_3] : memref<9x512xf32, #tpu.memory_space<vmem>>, vector<9x512xf32>
    %cst = arith.constant 5.000000e-01 : f32
    %3 = vector.broadcast %cst : f32 to vector<4x512xf32>
    %4 = arith.mulf %3, %1 : vector<4x512xf32>
    %cst_4 = arith.constant 0.707106769 : f32
    %5 = vector.broadcast %cst_4 : f32 to vector<4x512xf32>
    %6 = arith.mulf %1, %5 : vector<4x512xf32>
    %7 = math.erf %6 : vector<4x512xf32>
    %cst_5 = arith.constant 1.000000e+00 : f32
    %8 = vector.broadcast %cst_5 : f32 to vector<4x512xf32>
    %9 = arith.addf %8, %7 : vector<4x512xf32>
    %10 = arith.mulf %4, %9 : vector<4x512xf32>
    %c0_6 = arith.constant 0 : index
    %c0_7 = arith.constant 0 : index
    %11 = vector.load %arg3[%c0_6, %c0_7] : memref<8x4xf32, #tpu.memory_space<vmem>>, vector<8x4xf32>
    %cst_8 = arith.constant dense<0.000000e+00> : vector<8x512xf32>
    %12 = tpu.matmul %11, %10, %cst_8 {dimension_numbers = #tpu.dot_dimension_numbers<[1], [0], [0], [1], [0, 0, 1, 1], [], []>} : vector<8x4xf32>, vector<4x512xf32>, vector<8x512xf32> -> vector<8x512xf32>
    %c0_9 = arith.constant 0 : index
    %c0_10 = arith.constant 0 : index
    %13 = vector.load %arg4[%c0_9, %c0_10] : memref<8x1xf32, #tpu.memory_space<vmem>>, vector<8x1xf32>
    %14 = vector.broadcast %13 : vector<8x1xf32> to vector<8x512xf32>
    %15 = arith.addf %12, %14 : vector<8x512xf32>
    %cst_11 = arith.constant 5.000000e-01 : f32
    %16 = vector.broadcast %cst_11 : f32 to vector<8x512xf32>
    %17 = arith.mulf %16, %15 : vector<8x512xf32>
    %cst_12 = arith.constant 0.707106769 : f32
    %18 = vector.broadcast %cst_12 : f32 to vector<8x512xf32>
    %19 = arith.mulf %15, %18 : vector<8x512xf32>
    %20 = math.erf %19 : vector<8x512xf32>
    %cst_13 = arith.constant 1.000000e+00 : f32
    %21 = vector.broadcast %cst_13 : f32 to vector<8x512xf32>
    %22 = arith.addf %21, %20 : vector<8x512xf32>
    %23 = arith.mulf %17, %22 : vector<8x512xf32>
    %c17_i32 = arith.constant 17 : i32
    %24 = tpu.dynamic_rotate %23 by %c17_i32 dim 1 : vector<8x512xf32>, i32 -> vector<8x512xf32>
    %25 = vector.extract_strided_slice %2 {offsets = [0, 0], sizes = [1, 512], strides = [1, 1]} : vector<9x512xf32> to vector<1x512xf32>
    %26 = vector.broadcast %25 : vector<1x512xf32> to vector<8x512xf32>
    %27 = arith.mulf %24, %26 : vector<8x512xf32>
    %c0_14 = arith.constant 0 : index
    %c0_15 = arith.constant 0 : index
    %28 = vector.load %arg12[%c0_14, %c0_15] : memref<72x512xf32, #tpu.memory_space<vmem>>, vector<8x512xf32>
    tpu.vector_store %arg12[%c0_14, %c0_15], %27 {strides = array<i32>} : memref<72x512xf32, #tpu.memory_space<vmem>>, vector<8x512xf32>,
    %c16_i32 = arith.constant 16 : i32
    %29 = tpu.dynamic_rotate %23 by %c16_i32 dim 1 : vector<8x512xf32>, i32 -> vector<8x512xf32>
    %30 = vector.extract_strided_slice %2 {offsets = [1, 0], sizes = [1, 512], strides = [1, 1]} : vector<9x512xf32> to vector<1x512xf32>
    %31 = vector.broadcast %30 : vector<1x512xf32> to vector<8x512xf32>
    %32 = arith.mulf %29, %31 : vector<8x512xf32>
    %c8 = arith.constant 8 : index
    %c0_16 = arith.constant 0 : index
    %33 = vector.load %arg12[%c8, %c0_16] : memref<72x512xf32, #tpu.memory_space<vmem>>, vector<8x512xf32>
    tpu.vector_store %arg12[%c8, %c0_16], %32 {strides = array<i32>} : memref<72x512xf32, #tpu.memory_space<vmem>>, vector<8x512xf32>,
    %c15_i32 = arith.constant 15 : i32
    %34 = tpu.dynamic_rotate %23 by %c15_i32 dim 1 : vector<8x512xf32>, i32 -> vector<8x512xf32>
    %35 = vector.extract_strided_slice %2 {offsets = [2, 0], sizes = [1, 512], strides = [1, 1]} : vector<9x512xf32> to vector<1x512xf32>
    %36 = vector.broadcast %35 : vector<1x512xf32> to vector<8x512xf32>
    %37 = arith.mulf %34, %36 : vector<8x512xf32>
    %c16 = arith.constant 16 : index
    %c0_17 = arith.constant 0 : index
    %38 = vector.load %arg12[%c16, %c0_17] : memref<72x512xf32, #tpu.memory_space<vmem>>, vector<8x512xf32>
    tpu.vector_store %arg12[%c16, %c0_17], %37 {strides = array<i32>} : memref<72x512xf32, #tpu.memory_space<vmem>>, vector<8x512xf32>,
    %c1_i32 = arith.constant 1 : i32
    %39 = tpu.dynamic_rotate %23 by %c1_i32 dim 1 : vector<8x512xf32>, i32 -> vector<8x512xf32>
    %40 = vector.extract_strided_slice %2 {offsets = [3, 0], sizes = [1, 512], strides = [1, 1]} : vector<9x512xf32> to vector<1x512xf32>
    %41 = vector.broadcast %40 : vector<1x512xf32> to vector<8x512xf32>
    %42 = arith.mulf %39, %41 : vector<8x512xf32>
    %c24 = arith.constant 24 : index
    %c0_18 = arith.constant 0 : index
    %43 = vector.load %arg12[%c24, %c0_18] : memref<72x512xf32, #tpu.memory_space<vmem>>, vector<8x512xf32>
    tpu.vector_store %arg12[%c24, %c0_18], %42 {strides = array<i32>} : memref<72x512xf32, #tpu.memory_space<vmem>>, vector<8x512xf32>,
    %c32 = arith.constant 32 : index
    %c0_19 = arith.constant 0 : index
    %44 = vector.load %arg12[%c32, %c0_19] : memref<72x512xf32, #tpu.memory_space<vmem>>, vector<8x512xf32>
    tpu.vector_store %arg12[%c32, %c0_19], %23 {strides = array<i32>} : memref<72x512xf32, #tpu.memory_space<vmem>>, vector<8x512xf32>,
    %c511_i32 = arith.constant 511 : i32
    %45 = tpu.dynamic_rotate %23 by %c511_i32 dim 1 : vector<8x512xf32>, i32 -> vector<8x512xf32>
    %46 = vector.extract_strided_slice %2 {offsets = [5, 0], sizes = [1, 512], strides = [1, 1]} : vector<9x512xf32> to vector<1x512xf32>
    %47 = vector.broadcast %46 : vector<1x512xf32> to vector<8x512xf32>
    %48 = arith.mulf %45, %47 : vector<8x512xf32>
    %c40 = arith.constant 40 : index
    %c0_20 = arith.constant 0 : index
    %49 = vector.load %arg12[%c40, %c0_20] : memref<72x512xf32, #tpu.memory_space<vmem>>, vector<8x512xf32>
    tpu.vector_store %arg12[%c40, %c0_20], %48 {strides = array<i32>} : memref<72x512xf32, #tpu.memory_space<vmem>>, vector<8x512xf32>,
    %c497_i32 = arith.constant 497 : i32
    %50 = tpu.dynamic_rotate %23 by %c497_i32 dim 1 : vector<8x512xf32>, i32 -> vector<8x512xf32>
    %51 = vector.extract_strided_slice %2 {offsets = [6, 0], sizes = [1, 512], strides = [1, 1]} : vector<9x512xf32> to vector<1x512xf32>
    %52 = vector.broadcast %51 : vector<1x512xf32> to vector<8x512xf32>
    %53 = arith.mulf %50, %52 : vector<8x512xf32>
    %c48 = arith.constant 48 : index
    %c0_21 = arith.constant 0 : index
    %54 = vector.load %arg12[%c48, %c0_21] : memref<72x512xf32, #tpu.memory_space<vmem>>, vector<8x512xf32>
    tpu.vector_store %arg12[%c48, %c0_21], %53 {strides = array<i32>} : memref<72x512xf32, #tpu.memory_space<vmem>>, vector<8x512xf32>,
    %c496_i32 = arith.constant 496 : i32
    %55 = tpu.dynamic_rotate %23 by %c496_i32 dim 1 : vector<8x512xf32>, i32 -> vector<8x512xf32>
    %56 = vector.extract_strided_slice %2 {offsets = [7, 0], sizes = [1, 512], strides = [1, 1]} : vector<9x512xf32> to vector<1x512xf32>
    %57 = vector.broadcast %56 : vector<1x512xf32> to vector<8x512xf32>
    %58 = arith.mulf %55, %57 : vector<8x512xf32>
    %c56 = arith.constant 56 : index
    %c0_22 = arith.constant 0 : index
    %59 = vector.load %arg12[%c56, %c0_22] : memref<72x512xf32, #tpu.memory_space<vmem>>, vector<8x512xf32>
    tpu.vector_store %arg12[%c56, %c0_22], %58 {strides = array<i32>} : memref<72x512xf32, #tpu.memory_space<vmem>>, vector<8x512xf32>,
    %c495_i32 = arith.constant 495 : i32
    %60 = tpu.dynamic_rotate %23 by %c495_i32 dim 1 : vector<8x512xf32>, i32 -> vector<8x512xf32>
    %61 = vector.extract_strided_slice %2 {offsets = [8, 0], sizes = [1, 512], strides = [1, 1]} : vector<9x512xf32> to vector<1x512xf32>
    %62 = vector.broadcast %61 : vector<1x512xf32> to vector<8x512xf32>
    %63 = arith.mulf %60, %62 : vector<8x512xf32>
    %c64 = arith.constant 64 : index
    %c0_23 = arith.constant 0 : index
    %64 = vector.load %arg12[%c64, %c0_23] : memref<72x512xf32, #tpu.memory_space<vmem>>, vector<8x512xf32>
    tpu.vector_store %arg12[%c64, %c0_23], %63 {strides = array<i32>} : memref<72x512xf32, #tpu.memory_space<vmem>>, vector<8x512xf32>,
    %c0_24 = arith.constant 0 : index
    %c0_25 = arith.constant 0 : index
    %65 = vector.load %arg5[%c0_24, %c0_25] : memref<8x72xf32, #tpu.memory_space<vmem>>, vector<8x72xf32>
    %c0_26 = arith.constant 0 : index
    %c0_27 = arith.constant 0 : index
    %66 = vector.load %arg12[%c0_26, %c0_27] : memref<72x512xf32, #tpu.memory_space<vmem>>, vector<72x512xf32>
    %cst_28 = arith.constant dense<0.000000e+00> : vector<8x512xf32>
    %67 = tpu.matmul %65, %66, %cst_28 {dimension_numbers = #tpu.dot_dimension_numbers<[1], [0], [0], [1], [0, 0, 1, 1], [], []>} : vector<8x72xf32>, vector<72x512xf32>, vector<8x512xf32> -> vector<8x512xf32>
    %c0_29 = arith.constant 0 : index
    %c0_30 = arith.constant 0 : index
    %68 = vector.load %arg6[%c0_29, %c0_30] : memref<8x1xf32, #tpu.memory_space<vmem>>, vector<8x1xf32>
    %69 = vector.broadcast %68 : vector<8x1xf32> to vector<8x512xf32>
    %70 = arith.addf %67, %69 : vector<8x512xf32>
    %cst_31 = arith.constant 5.000000e-01 : f32
    %71 = vector.broadcast %cst_31 : f32 to vector<8x512xf32>
    %72 = arith.mulf %71, %70 : vector<8x512xf32>
    %cst_32 = arith.constant 0.707106769 : f32
    %73 = vector.broadcast %cst_32 : f32 to vector<8x512xf32>
    %74 = arith.mulf %70, %73 : vector<8x512xf32>
    %75 = math.erf %74 : vector<8x512xf32>
    %cst_33 = arith.constant 1.000000e+00 : f32
    %76 = vector.broadcast %cst_33 : f32 to vector<8x512xf32>
    %77 = arith.addf %76, %75 : vector<8x512xf32>
    %78 = arith.mulf %72, %77 : vector<8x512xf32>
    %c17_i32_34 = arith.constant 17 : i32
    %79 = tpu.dynamic_rotate %78 by %c17_i32_34 dim 1 : vector<8x512xf32>, i32 -> vector<8x512xf32>
    %80 = vector.extract_strided_slice %2 {offsets = [0, 0], sizes = [1, 512], strides = [1, 1]} : vector<9x512xf32> to vector<1x512xf32>
    %81 = vector.broadcast %80 : vector<1x512xf32> to vector<8x512xf32>
    %82 = arith.mulf %79, %81 : vector<8x512xf32>
    %c0_35 = arith.constant 0 : index
    %c0_36 = arith.constant 0 : index
    %83 = vector.load %arg12[%c0_35, %c0_36] : memref<72x512xf32, #tpu.memory_space<vmem>>, vector<8x512xf32>
    tpu.vector_store %arg12[%c0_35, %c0_36], %82 {strides = array<i32>} : memref<72x512xf32, #tpu.memory_space<vmem>>, vector<8x512xf32>,
    %c16_i32_37 = arith.constant 16 : i32
    %84 = tpu.dynamic_rotate %78 by %c16_i32_37 dim 1 : vector<8x512xf32>, i32 -> vector<8x512xf32>
    %85 = vector.extract_strided_slice %2 {offsets = [1, 0], sizes = [1, 512], strides = [1, 1]} : vector<9x512xf32> to vector<1x512xf32>
    %86 = vector.broadcast %85 : vector<1x512xf32> to vector<8x512xf32>
    %87 = arith.mulf %84, %86 : vector<8x512xf32>
    %c8_38 = arith.constant 8 : index
    %c0_39 = arith.constant 0 : index
    %88 = vector.load %arg12[%c8_38, %c0_39] : memref<72x512xf32, #tpu.memory_space<vmem>>, vector<8x512xf32>
    tpu.vector_store %arg12[%c8_38, %c0_39], %87 {strides = array<i32>} : memref<72x512xf32, #tpu.memory_space<vmem>>, vector<8x512xf32>,
    %c15_i32_40 = arith.constant 15 : i32
    %89 = tpu.dynamic_rotate %78 by %c15_i32_40 dim 1 : vector<8x512xf32>, i32 -> vector<8x512xf32>
    %90 = vector.extract_strided_slice %2 {offsets = [2, 0], sizes = [1, 512], strides = [1, 1]} : vector<9x512xf32> to vector<1x512xf32>
    %91 = vector.broadcast %90 : vector<1x512xf32> to vector<8x512xf32>
    %92 = arith.mulf %89, %91 : vector<8x512xf32>
    %c16_41 = arith.constant 16 : index
    %c0_42 = arith.constant 0 : index
    %93 = vector.load %arg12[%c16_41, %c0_42] : memref<72x512xf32, #tpu.memory_space<vmem>>, vector<8x512xf32>
    tpu.vector_store %arg12[%c16_41, %c0_42], %92 {strides = array<i32>} : memref<72x512xf32, #tpu.memory_space<vmem>>, vector<8x512xf32>,
    %c1_i32_43 = arith.constant 1 : i32
    %94 = tpu.dynamic_rotate %78 by %c1_i32_43 dim 1 : vector<8x512xf32>, i32 -> vector<8x512xf32>
    %95 = vector.extract_strided_slice %2 {offsets = [3, 0], sizes = [1, 512], strides = [1, 1]} : vector<9x512xf32> to vector<1x512xf32>
    %96 = vector.broadcast %95 : vector<1x512xf32> to vector<8x512xf32>
    %97 = arith.mulf %94, %96 : vector<8x512xf32>
    %c24_44 = arith.constant 24 : index
    %c0_45 = arith.constant 0 : index
    %98 = vector.load %arg12[%c24_44, %c0_45] : memref<72x512xf32, #tpu.memory_space<vmem>>, vector<8x512xf32>
    tpu.vector_store %arg12[%c24_44, %c0_45], %97 {strides = array<i32>} : memref<72x512xf32, #tpu.memory_space<vmem>>, vector<8x512xf32>,
    %c32_46 = arith.constant 32 : index
    %c0_47 = arith.constant 0 : index
    %99 = vector.load %arg12[%c32_46, %c0_47] : memref<72x512xf32, #tpu.memory_space<vmem>>, vector<8x512xf32>
    tpu.vector_store %arg12[%c32_46, %c0_47], %78 {strides = array<i32>} : memref<72x512xf32, #tpu.memory_space<vmem>>, vector<8x512xf32>,
    %c511_i32_48 = arith.constant 511 : i32
    %100 = tpu.dynamic_rotate %78 by %c511_i32_48 dim 1 : vector<8x512xf32>, i32 -> vector<8x512xf32>
    %101 = vector.extract_strided_slice %2 {offsets = [5, 0], sizes = [1, 512], strides = [1, 1]} : vector<9x512xf32> to vector<1x512xf32>
    %102 = vector.broadcast %101 : vector<1x512xf32> to vector<8x512xf32>
    %103 = arith.mulf %100, %102 : vector<8x512xf32>
    %c40_49 = arith.constant 40 : index
    %c0_50 = arith.constant 0 : index
    %104 = vector.load %arg12[%c40_49, %c0_50] : memref<72x512xf32, #tpu.memory_space<vmem>>, vector<8x512xf32>
    tpu.vector_store %arg12[%c40_49, %c0_50], %103 {strides = array<i32>} : memref<72x512xf32, #tpu.memory_space<vmem>>, vector<8x512xf32>,
    %c497_i32_51 = arith.constant 497 : i32
    %105 = tpu.dynamic_rotate %78 by %c497_i32_51 dim 1 : vector<8x512xf32>, i32 -> vector<8x512xf32>
    %106 = vector.extract_strided_slice %2 {offsets = [6, 0], sizes = [1, 512], strides = [1, 1]} : vector<9x512xf32> to vector<1x512xf32>
    %107 = vector.broadcast %106 : vector<1x512xf32> to vector<8x512xf32>
    %108 = arith.mulf %105, %107 : vector<8x512xf32>
    %c48_52 = arith.constant 48 : index
    %c0_53 = arith.constant 0 : index
    %109 = vector.load %arg12[%c48_52, %c0_53] : memref<72x512xf32, #tpu.memory_space<vmem>>, vector<8x512xf32>
    tpu.vector_store %arg12[%c48_52, %c0_53], %108 {strides = array<i32>} : memref<72x512xf32, #tpu.memory_space<vmem>>, vector<8x512xf32>,
    %c496_i32_54 = arith.constant 496 : i32
    %110 = tpu.dynamic_rotate %78 by %c496_i32_54 dim 1 : vector<8x512xf32>, i32 -> vector<8x512xf32>
    %111 = vector.extract_strided_slice %2 {offsets = [7, 0], sizes = [1, 512], strides = [1, 1]} : vector<9x512xf32> to vector<1x512xf32>
    %112 = vector.broadcast %111 : vector<1x512xf32> to vector<8x512xf32>
    %113 = arith.mulf %110, %112 : vector<8x512xf32>
    %c56_55 = arith.constant 56 : index
    %c0_56 = arith.constant 0 : index
    %114 = vector.load %arg12[%c56_55, %c0_56] : memref<72x512xf32, #tpu.memory_space<vmem>>, vector<8x512xf32>
    tpu.vector_store %arg12[%c56_55, %c0_56], %113 {strides = array<i32>} : memref<72x512xf32, #tpu.memory_space<vmem>>, vector<8x512xf32>,
    %c495_i32_57 = arith.constant 495 : i32
    %115 = tpu.dynamic_rotate %78 by %c495_i32_57 dim 1 : vector<8x512xf32>, i32 -> vector<8x512xf32>
    %116 = vector.extract_strided_slice %2 {offsets = [8, 0], sizes = [1, 512], strides = [1, 1]} : vector<9x512xf32> to vector<1x512xf32>
    %117 = vector.broadcast %116 : vector<1x512xf32> to vector<8x512xf32>
    %118 = arith.mulf %115, %117 : vector<8x512xf32>
    %c64_58 = arith.constant 64 : index
    %c0_59 = arith.constant 0 : index
    %119 = vector.load %arg12[%c64_58, %c0_59] : memref<72x512xf32, #tpu.memory_space<vmem>>, vector<8x512xf32>
    tpu.vector_store %arg12[%c64_58, %c0_59], %118 {strides = array<i32>} : memref<72x512xf32, #tpu.memory_space<vmem>>, vector<8x512xf32>,
    %c0_60 = arith.constant 0 : index
    %c0_61 = arith.constant 0 : index
    %120 = vector.load %arg7[%c0_60, %c0_61] : memref<8x72xf32, #tpu.memory_space<vmem>>, vector<8x72xf32>
    %c0_62 = arith.constant 0 : index
    %c0_63 = arith.constant 0 : index
    %121 = vector.load %arg12[%c0_62, %c0_63] : memref<72x512xf32, #tpu.memory_space<vmem>>, vector<72x512xf32>
    %cst_64 = arith.constant dense<0.000000e+00> : vector<8x512xf32>
    %122 = tpu.matmul %120, %121, %cst_64 {dimension_numbers = #tpu.dot_dimension_numbers<[1], [0], [0], [1], [0, 0, 1, 1], [], []>} : vector<8x72xf32>, vector<72x512xf32>, vector<8x512xf32> -> vector<8x512xf32>
    %c0_65 = arith.constant 0 : index
    %c0_66 = arith.constant 0 : index
    %123 = vector.load %arg8[%c0_65, %c0_66] : memref<8x1xf32, #tpu.memory_space<vmem>>, vector<8x1xf32>
    %124 = vector.broadcast %123 : vector<8x1xf32> to vector<8x512xf32>
    %125 = arith.addf %122, %124 : vector<8x512xf32>
    %cst_67 = arith.constant 5.000000e-01 : f32
    %126 = vector.broadcast %cst_67 : f32 to vector<8x512xf32>
    %127 = arith.mulf %126, %125 : vector<8x512xf32>
    %cst_68 = arith.constant 0.707106769 : f32
    %128 = vector.broadcast %cst_68 : f32 to vector<8x512xf32>
    %129 = arith.mulf %125, %128 : vector<8x512xf32>
    %130 = math.erf %129 : vector<8x512xf32>
    %cst_69 = arith.constant 1.000000e+00 : f32
    %131 = vector.broadcast %cst_69 : f32 to vector<8x512xf32>
    %132 = arith.addf %131, %130 : vector<8x512xf32>
    %133 = arith.mulf %127, %132 : vector<8x512xf32>
    %c0_70 = arith.constant 0 : index
    %c0_71 = arith.constant 0 : index
    %134 = vector.load %arg9[%c0_70, %c0_71] : memref<4x8xf32, #tpu.memory_space<vmem>>, vector<4x8xf32>
    %cst_72 = arith.constant dense<0.000000e+00> : vector<4x512xf32>
    %135 = tpu.matmul %134, %133, %cst_72 {dimension_numbers = #tpu.dot_dimension_numbers<[1], [0], [0], [1], [0, 0, 1, 1], [], []>} : vector<4x8xf32>, vector<8x512xf32>, vector<4x512xf32> -> vector<4x512xf32>
    %c0_73 = arith.constant 0 : index
    %c0_74 = arith.constant 0 : index
    %136 = vector.load %arg10[%c0_73, %c0_74] : memref<4x1xf32, #tpu.memory_space<vmem>>, vector<4x1xf32>
    %137 = vector.broadcast %136 : vector<4x1xf32> to vector<4x512xf32>
    %138 = arith.addf %135, %137 : vector<4x512xf32>
    %139 = arith.addf %138, %1 : vector<4x512xf32>
    %c0_75 = arith.constant 0 : index
    %c0_76 = arith.constant 0 : index
    %c0_77 = arith.constant 0 : index
    %140 = vector.load %arg11[%c0_75, %c0_76, %c0_77] : memref<1x4x512xf32, #tpu.memory_space<vmem>>, vector<1x4x512xf32>
    %141 = vector.shape_cast %140 : vector<1x4x512xf32> to vector<4x512xf32>
    %142 = vector.shape_cast %139 : vector<4x512xf32> to vector<1x4x512xf32>
    tpu.vector_store %arg11[%c0_75, %c0_76, %c0_77], %142 {strides = array<i32>} : memref<1x4x512xf32, #tpu.memory_space<vmem>>, vector<1x4x512xf32>,
    return
  }
  func.func @transform_0(%arg0: i32) -> (i32, i32, i32) {
    %c0_i32 = arith.constant 0 : i32
    %c0_i32_0 = arith.constant 0 : i32
    %c0_i32_1 = arith.constant 0 : i32
    return %arg0, %c0_i32, %c0_i32_0 : i32, i32, i32
  }
  func.func @transform_1(%arg0: i32) -> (i32, i32) {
    %c0_i32 = arith.constant 0 : i32
    %c0_i32_0 = arith.constant 0 : i32
    %c0_i32_1 = arith.constant 0 : i32
    return %c0_i32, %c0_i32_0 : i32, i32
  }
  func.func @transform_2(%arg0: i32) -> (i32, i32) {
    %c0_i32 = arith.constant 0 : i32
    %c0_i32_0 = arith.constant 0 : i32
    %c0_i32_1 = arith.constant 0 : i32
    return %c0_i32, %c0_i32_0 : i32, i32
  }
  func.func @transform_3(%arg0: i32) -> (i32, i32) {
    %c0_i32 = arith.constant 0 : i32
    %c0_i32_0 = arith.constant 0 : i32
    %c0_i32_1 = arith.constant 0 : i32
    return %c0_i32, %c0_i32_0 : i32, i32
  }
  func.func @transform_4(%arg0: i32) -> (i32, i32) {
    %c0_i32 = arith.constant 0 : i32
    %c0_i32_0 = arith.constant 0 : i32
    %c0_i32_1 = arith.constant 0 : i32
    return %c0_i32, %c0_i32_0 : i32, i32
  }
  func.func @transform_5(%arg0: i32) -> (i32, i32) {
    %c0_i32 = arith.constant 0 : i32
    %c0_i32_0 = arith.constant 0 : i32
    %c0_i32_1 = arith.constant 0 : i32
    return %c0_i32, %c0_i32_0 : i32, i32
  }
  func.func @transform_6(%arg0: i32) -> (i32, i32) {
    %c0_i32 = arith.constant 0 : i32
    %c0_i32_0 = arith.constant 0 : i32
    %c0_i32_1 = arith.constant 0 : i32
    return %c0_i32, %c0_i32_0 : i32, i32
  }
  func.func @transform_7(%arg0: i32) -> (i32, i32) {
    %c0_i32 = arith.constant 0 : i32
    %c0_i32_0 = arith.constant 0 : i32
    %c0_i32_1 = arith.constant 0 : i32
    return %c0_i32, %c0_i32_0 : i32, i32
  }
  func.func @transform_8(%arg0: i32) -> (i32, i32) {
    %c0_i32 = arith.constant 0 : i32
    %c0_i32_0 = arith.constant 0 : i32
    %c0_i32_1 = arith.constant 0 : i32
    return %c0_i32, %c0_i32_0 : i32, i32
  }
  func.func @transform_9(%arg0: i32) -> (i32, i32) {
    %c0_i32 = arith.constant 0 : i32
    %c0_i32_0 = arith.constant 0 : i32
    %c0_i32_1 = arith.constant 0 : i32
    return %c0_i32, %c0_i32_0 : i32, i32
  }
  func.func @transform_10(%arg0: i32) -> (i32, i32, i32) {
    %c0_i32 = arith.constant 0 : i32
    %c0_i32_0 = arith.constant 0 : i32
    %c0_i32_1 = arith.constant 0 : i32
    return %arg0, %c0_i32, %c0_i32_0 : i32, i32, i32
  }
}

</mosaic_0001>

<llo_original>
// kernel: block_forward.1
$region0: #{block_forward.1}
  #allocation0 [shape = 'u32[]', space=smem, size = 0x4, offset = 0x4, fixed_abs, tag = 'smem constant byte address 0x4 - core index']
  #allocation1 [shape = 'u32[144,128]{1,0:T(1,128)}', space=vmem, size = 0x12000, scoped, tag = 'internal scratch']
  #allocation2 [shape = 'f32[72,512]{1,0:T(8,128)}', space=vmem, size = 0x24000, scoped, tag = 'scratch operand']
  %s0 = inlined_call_operand.vmem [shape: f32[1,4,512], index: 0, kind: input, shape index: {}]
  %s1 = inlined_call_operand.vmem [shape: f32[9,512], index: 1, kind: input, shape index: {}]
  %s2 = inlined_call_operand.vmem [shape: f32[8,4], index: 2, kind: input, shape index: {}]
  %s3 = inlined_call_operand.vmem [shape: f32[8,1], index: 3, kind: input, shape index: {}]
  %s4 = inlined_call_operand.vmem [shape: f32[8,72], index: 4, kind: input, shape index: {}]
  %s5 = inlined_call_operand.vmem [shape: f32[8,1], index: 5, kind: input, shape index: {}]
  %s6 = inlined_call_operand.vmem [shape: f32[8,72], index: 6, kind: input, shape index: {}]
  %s7 = inlined_call_operand.vmem [shape: f32[8,1], index: 7, kind: input, shape index: {}]
  %s8 = inlined_call_operand.vmem [shape: f32[4,8], index: 8, kind: input, shape index: {}]
  %s9 = inlined_call_operand.vmem [shape: f32[4,1], index: 9, kind: input, shape index: {}]
  %s10 = inlined_call_operand.vmem [shape: f32[1,4,512], index: 10, kind: output, shape index: {}]
  %s11 = sld [smem:[#allocation0]]
  $region50: #{block_forward.1} parent=0
    _
  %s13 = ssub.s32 1, %s11
  %s14 = scalar_select 0, %s13, %s11
  // Predicated region
  $region2: #{block_forward.1} parent=0 // pred_check
    _
  $region3: #{block_forward.1} parent=0 // pred_check_branch
    %16 = sbr.rel (0) target = $region5
  $region4: #{block_forward.1} parent=0 // pred_region
    _
  $region5: #{block_forward.1} parent=0 // pred_fallthru
    _
  // Predicated region
  $region6: #{block_forward.1} parent=0 // pred_check
    _
  $region7: #{block_forward.1} parent=0 // pred_check_branch
    %18 = sbr.rel (0) target = $region9
  $region8: #{block_forward.1} parent=0 // pred_region
    _
  $region9: #{block_forward.1} parent=0 // pred_fallthru
    _
  // Predicated region
  $region10: #{block_forward.1} parent=0 // pred_check
    _
  $region11: #{block_forward.1} parent=0 // pred_check_branch
    %20 = sbr.rel (0) target = $region13
  $region12: #{block_forward.1} parent=0 // pred_region
    _
  $region13: #{block_forward.1} parent=0 // pred_fallthru
    _
  // Predicated region
  $region14: #{block_forward.1} parent=0 // pred_check
    _
  $region15: #{block_forward.1} parent=0 // pred_check_branch
    %22 = sbr.rel (0) target = $region17
  $region16: #{block_forward.1} parent=0 // pred_region
    _
  $region17: #{block_forward.1} parent=0 // pred_fallthru
    _
  // Predicated region
  $region18: #{block_forward.1} parent=0 // pred_check
    _
  $region19: #{block_forward.1} parent=0 // pred_check_branch
    %24 = sbr.rel (0) target = $region21
  $region20: #{block_forward.1} parent=0 // pred_region
    _
  $region21: #{block_forward.1} parent=0 // pred_fallthru
    _
  // Predicated region
  $region22: #{block_forward.1} parent=0 // pred_check
    _
  $region23: #{block_forward.1} parent=0 // pred_check_branch
    %26 = sbr.rel (0) target = $region25
  $region24: #{block_forward.1} parent=0 // pred_region
    _
  $region25: #{block_forward.1} parent=0 // pred_fallthru
    _
  // Predicated region
  $region26: #{block_forward.1} parent=0 // pred_check
    _
  $region27: #{block_forward.1} parent=0 // pred_check_branch
    %28 = sbr.rel (0) target = $region29
  $region28: #{block_forward.1} parent=0 // pred_region
    _
  $region29: #{block_forward.1} parent=0 // pred_fallthru
    _
  // Predicated region
  $region30: #{block_forward.1} parent=0 // pred_check
    _
  $region31: #{block_forward.1} parent=0 // pred_check_branch
    %30 = sbr.rel (0) target = $region33
  $region32: #{block_forward.1} parent=0 // pred_region
    _
  $region33: #{block_forward.1} parent=0 // pred_fallthru
    _
  // Predicated region
  $region34: #{block_forward.1} parent=0 // pred_check
    _
  $region35: #{block_forward.1} parent=0 // pred_check_branch
    %32 = sbr.rel (0) target = $region37
  $region36: #{block_forward.1} parent=0 // pred_region
    _
  $region37: #{block_forward.1} parent=0 // pred_fallthru
    _
  // Predicated region
  $region38: #{block_forward.1} parent=0 // pred_check
    _
  $region39: #{block_forward.1} parent=0 // pred_check_branch
    %34 = sbr.rel (0) target = $region41
  $region40: #{block_forward.1} parent=0 // pred_region
    _
  $region41: #{block_forward.1} parent=0 // pred_fallthru
    _
  %v35 = vld [vmem:[%s0] sm:$0xff]
  %v36 = vld [vmem:[%s0 + $0x8] sm:$0xff]
  %v37 = vld [vmem:[%s1] sm:$0xff]
  %v38 = vld [vmem:[%s1 + $0x8] sm:$0xff]
  %v39 = vld [vmem:[%s1 + $0x10] sm:$0xff]
  %v40 = vld [vmem:[%s1 + $0x18] sm:$0xff]
  %v41 = vld [vmem:[%s1 + $0x20] sm:$0x1]
  %v42 = vld [vmem:[%s1 + $0x28] sm:$0x1]
  %v43 = vld [vmem:[%s1 + $0x30] sm:$0x1]
  %v44 = vld [vmem:[%s1 + $0x38] sm:$0x1]
  %v45 = vmul.f32 %v35, 0.5
  %v46 = vmul.f32 %v36, 0.5
  %v47 = vmul.f32 %v35, 0.70710677
  %v48 = vmul.f32 %v36, 0.70710677
  %v49 = verf.f32.pop %v47
  %v50 = verf.f32.pop %v48
  %v51 = vadd.f32 %v49, 1.0
  %v52 = vadd.f32 %v50, 1.0
  %v53 = vmul.f32 %v45, %v51
  %v54 = vmul.f32 %v46, %v52
  %v55 = vld [vmem:[%s2] sm:$0xff]
  %v56 = vld [vmem:[%s3] sm:$0xff]
  %58 = vset.pattern.permute.xlu0 0
  %59 = vperm.xlu0 %58, %v56
  %v60 = vpop.permute.xlu0 %59
  %v64 = vcombine.high %v53, %v53
  %v65 = vcombine.high %v54, %v54
  %vm66 = vcmask 31744
  %v68 = vsel %vm66, %v55, 0
  %vm70 = vcmask 1043456
  %v71 = vsel %vm70, %v53, 0
  %v73 = vsel %vm70, %v64, 0
  %v75 = vsel %vm70, %v54, 0
  %v77 = vsel %vm70, %v65, 0
  %79 = vmatprep.subr.mxu0 0.0
  %80 = vmatpush1.msra.mxu0 0.0
  %81 = vmatprep.subr.mxu0 0.0
  %82 = vmatpush1.msra.mxu0 0.0
  %83 = vmatprep.subr.mxu0 0.0
  %84 = vmatpush1.msra.mxu0 0.0
  %85 = vmatprep.subr.mxu0 0.0
  %86 = vmatpush1.msra.mxu0 0.0
  %87 = vmatprep.subr.mxu0 0.0
  %88 = vmatpush1.msra.mxu0 0.0
  %89 = vmatprep.subr.mxu0 0.0
  %90 = vmatpush1.msra.mxu0 0.0
  %91 = vmatprep.subr.mxu0 0.0
  %92 = vmatpush1.msra.mxu0 0.0
  %93 = vmatprep.subr.mxu0 0.0
  %94 = vmatpush1.msra.mxu0 0.0
  %95 = vmatprep.subr.mxu0 0.0
  %96 = vmatpush1.msra.mxu0 0.0
  %97 = vmatprep.subr.mxu0 0.0
  %98 = vmatpush1.msra.mxu0 0.0
  %99 = vmatprep.subr.mxu0 0.0
  %100 = vmatpush1.msra.mxu0 0.0
  %101 = vmatprep.subr.mxu0 0.0
  %102 = vmatpush1.msra.mxu0 0.0
  %103 = vmatprep.subr.mxu0 0.0
  %104 = vmatpush1.msra.mxu0 0.0
  %105 = vmatprep.subr.mxu0 0.0
  %106 = vmatpush1.msra.mxu0 0.0
  %107 = vmatprep.subr.mxu0 0.0
  %108 = vmatpush1.msra.mxu0 0.0
  %109 = vmatprep.subr.mxu0 %v73
  %110 = vmatpush1.msra.mxu0 %v71
  %111 = vmatprep.subr.mxu0 0.0
  %112 = vmatpush2.msra.mxu0 0.0
  %113 = vmatprep.subr.mxu0 0.0
  %114 = vmatpush2.msra.mxu0 0.0
  %115 = vmatprep.subr.mxu0 0.0
  %116 = vmatpush2.msra.mxu0 0.0
  %117 = vmatprep.subr.mxu0 0.0
  %118 = vmatpush2.msra.mxu0 0.0
  %119 = vmatprep.subr.mxu0 0.0
  %120 = vmatpush2.msra.mxu0 0.0
  %121 = vmatprep.subr.mxu0 0.0
  %122 = vmatpush2.msra.mxu0 0.0
  %123 = vmatprep.subr.mxu0 0.0
  %124 = vmatpush2.msra.mxu0 0.0
  %125 = vmatprep.subr.mxu0 0.0
  %126 = vmatpush2.msra.mxu0 0.0
  %127 = vmatprep.subr.mxu0 0.0
  %128 = vmatpush2.msra.mxu0 0.0
  %129 = vmatprep.subr.mxu0 0.0
  %130 = vmatpush2.msra.mxu0 0.0
  %131 = vmatprep.subr.mxu0 0.0
  %132 = vmatpush2.msra.mxu0 0.0
  %133 = vmatprep.subr.mxu0 0.0
  %134 = vmatpush2.msra.mxu0 0.0
  %135 = vmatprep.subr.mxu0 0.0
  %136 = vmatpush2.msra.mxu0 0.0
  %137 = vmatprep.subr.mxu0 0.0
  %138 = vmatpush2.msra.mxu0 0.0
  %139 = vmatprep.subr.mxu0 0.0
  %140 = vmatpush2.msra.mxu0 0.0
  %141 = vmatprep.subr.mxu0 0.0
  %142 = vmatpush2.msra.mxu0 0.0
  %143 = vmatprep.mubr.f32.mxu0 0.0
  %144 = vmatmul.mubr.f32.gmra.mxu0 %v68
  %v145 = vpop.f32.mrf.mxu0
  %v146 = vadd.f32 %v60, %v145
  %v147 = vpop.f32.mrf.mxu0
  %v148 = vadd.f32 %v60, %v147
  %149 = vdwg.mxu0
  %150 = vmatprep.subr.mxu0 0.0
  %151 = vmatpush1.msra.mxu0 0.0
  %152 = vmatprep.subr.mxu0 0.0
  %153 = vmatpush1.msra.mxu0 0.0
  %154 = vmatprep.subr.mxu0 0.0
  %155 = vmatpush1.msra.mxu0 0.0
  %156 = vmatprep.subr.mxu0 0.0
  %157 = vmatpush1.msra.mxu0 0.0
  %158 = vmatprep.subr.mxu0 0.0
  %159 = vmatpush1.msra.mxu0 0.0
  %160 = vmatprep.subr.mxu0 0.0
  %161 = vmatpush1.msra.mxu0 0.0
  %162 = vmatprep.subr.mxu0 0.0
  %163 = vmatpush1.msra.mxu0 0.0
  %164 = vmatprep.subr.mxu0 0.0
  %165 = vmatpush1.msra.mxu0 0.0
  %166 = vmatprep.subr.mxu0 0.0
  %167 = vmatpush1.msra.mxu0 0.0
  %168 = vmatprep.subr.mxu0 0.0
  %169 = vmatpush1.msra.mxu0 0.0
  %170 = vmatprep.subr.mxu0 0.0
  %171 = vmatpush1.msra.mxu0 0.0
  %172 = vmatprep.subr.mxu0 0.0
  %173 = vmatpush1.msra.mxu0 0.0
  %174 = vmatprep.subr.mxu0 0.0
  %175 = vmatpush1.msra.mxu0 0.0
  %176 = vmatprep.subr.mxu0 0.0
  %177 = vmatpush1.msra.mxu0 0.0
  %178 = vmatprep.subr.mxu0 0.0
  %179 = vmatpush1.msra.mxu0 0.0
  %180 = vmatprep.subr.mxu0 %v77
  %181 = vmatpush1.msra.mxu0 %v75
  %182 = vmatprep.subr.mxu0 0.0
  %183 = vmatpush2.msra.mxu0 0.0
  %184 = vmatprep.subr.mxu0 0.0
  %185 = vmatpush2.msra.mxu0 0.0
  %186 = vmatprep.subr.mxu0 0.0
  %187 = vmatpush2.msra.mxu0 0.0
  %188 = vmatprep.subr.mxu0 0.0
  %189 = vmatpush2.msra.mxu0 0.0
  %190 = vmatprep.subr.mxu0 0.0
  %191 = vmatpush2.msra.mxu0 0.0
  %192 = vmatprep.subr.mxu0 0.0
  %193 = vmatpush2.msra.mxu0 0.0
  %194 = vmatprep.subr.mxu0 0.0
  %195 = vmatpush2.msra.mxu0 0.0
  %196 = vmatprep.subr.mxu0 0.0
  %197 = vmatpush2.msra.mxu0 0.0
  %198 = vmatprep.subr.mxu0 0.0
  %199 = vmatpush2.msra.mxu0 0.0
  %200 = vmatprep.subr.mxu0 0.0
  %201 = vmatpush2.msra.mxu0 0.0
  %202 = vmatprep.subr.mxu0 0.0
  %203 = vmatpush2.msra.mxu0 0.0
  %204 = vmatprep.subr.mxu0 0.0
  %205 = vmatpush2.msra.mxu0 0.0
  %206 = vmatprep.subr.mxu0 0.0
  %207 = vmatpush2.msra.mxu0 0.0
  %208 = vmatprep.subr.mxu0 0.0
  %209 = vmatpush2.msra.mxu0 0.0
  %210 = vmatprep.subr.mxu0 0.0
  %211 = vmatpush2.msra.mxu0 0.0
  %212 = vmatprep.subr.mxu0 0.0
  %213 = vmatpush2.msra.mxu0 0.0
  %214 = vmatprep.mubr.f32.mxu0 0.0
  %215 = vmatmul.mubr.f32.gmra.mxu0 %v68
  %v216 = vpop.f32.mrf.mxu0
  %v217 = vadd.f32 %v60, %v216
  %v218 = vpop.f32.mrf.mxu0
  %v219 = vadd.f32 %v60, %v218
  %220 = vdwg.mxu0
  %v221 = vmul.f32 %v146, 0.5
  %v222 = vmul.f32 %v148, 0.5
  %v223 = vmul.f32 %v217, 0.5
  %v224 = vmul.f32 %v219, 0.5
  %v225 = vmul.f32 %v146, 0.70710677
  %v226 = vmul.f32 %v148, 0.70710677
  %v227 = vmul.f32 %v217, 0.70710677
  %v228 = vmul.f32 %v219, 0.70710677
  %v229 = verf.f32.pop %v225
  %v230 = verf.f32.pop %v226
  %v231 = verf.f32.pop %v227
  %v232 = verf.f32.pop %v228
  %v233 = vadd.f32 %v229, 1.0
  %v234 = vadd.f32 %v230, 1.0
  %v235 = vadd.f32 %v231, 1.0
  %v236 = vadd.f32 %v232, 1.0
  %v237 = vmul.f32 %v221, %v233
  %v238 = vmul.f32 %v222, %v234
  %v239 = vmul.f32 %v223, %v235
  %v240 = vmul.f32 %v224, %v236
  %241 = vrot.lane.b32.xlu0 %v237, 17
  %v242 = vpop.permute.xlu0 %241
  %243 = vrot.lane.b32.xlu0 %v238, 17
  %v244 = vpop.permute.xlu0 %243
  %245 = vrot.lane.b32.xlu0 %v239, 17
  %v246 = vpop.permute.xlu0 %245
  %247 = vrot.lane.b32.xlu0 %v240, 17
  %v248 = vpop.permute.xlu0 %247
  %v249 = vlaneseq
  %v250 = vand.u32 %v249, 127
  %vm251 = vcmp.lt.s32.totalorder %v250, 17
  %v252 = vsel %vm251, %v246, %v248
  %v253 = vsel %vm251, %v244, %v246
  %v254 = vsel %vm251, %v242, %v244
  %v255 = vsel %vm251, %v248, %v242
  %v256 = vlaneseq
  %v257 = vshrl.u32 %v256, 7
  %v258 = vsub.s32 0, %v257
  %v259 = vrot.slane %v37, %v258
  %v260 = vlaneseq
  %v261 = vshrl.u32 %v260, 7
  %v262 = vsub.s32 0, %v261
  %v263 = vrot.slane %v38, %v262
  %v264 = vlaneseq
  %v265 = vshrl.u32 %v264, 7
  %v266 = vsub.s32 0, %v265
  %v267 = vrot.slane %v39, %v266
  %v268 = vlaneseq
  %v269 = vshrl.u32 %v268, 7
  %v270 = vsub.s32 0, %v269
  %v271 = vrot.slane %v40, %v270
  %v272 = vmul.f32 %v255, %v259
  %v273 = vmul.f32 %v254, %v263
  %v274 = vmul.f32 %v253, %v267
  %v275 = vmul.f32 %v252, %v271
  %276 = vst [vmem:[#allocation2] sm:$0xff] %v272
  %277 = vst [vmem:[#allocation2 + $0x8] sm:$0xff] %v273
  %278 = vst [vmem:[#allocation2 + $0x10] sm:$0xff] %v274
  %279 = vst [vmem:[#allocation2 + $0x18] sm:$0xff] %v275
  %280 = vrot.lane.b32.xlu0 %v237, 16
  %v281 = vpop.permute.xlu0 %280
  %282 = vrot.lane.b32.xlu0 %v238, 16
  %v283 = vpop.permute.xlu0 %282
  %284 = vrot.lane.b32.xlu0 %v239, 16
  %v285 = vpop.permute.xlu0 %284
  %286 = vrot.lane.b32.xlu0 %v240, 16
  %v287 = vpop.permute.xlu0 %286
  %vm288 = vcmp.lt.s32.totalorder %v250, 16
  %v289 = vsel %vm288, %v285, %v287
  %v290 = vsel %vm288, %v283, %v285
  %v291 = vsel %vm288, %v281, %v283
  %v292 = vsel %vm288, %v287, %v281
  %v293 = vlaneseq
  %v294 = vshrl.u32 %v293, 7
  %v295 = vsub.s32 1, %v294
  %v296 = vrot.slane %v37, %v295
  %v297 = vlaneseq
  %v298 = vshrl.u32 %v297, 7
  %v299 = vsub.s32 1, %v298
  %v300 = vrot.slane %v38, %v299
  %v301 = vlaneseq
  %v302 = vshrl.u32 %v301, 7
  %v303 = vsub.s32 1, %v302
  %v304 = vrot.slane %v39, %v303
  %v305 = vlaneseq
  %v306 = vshrl.u32 %v305, 7
  %v307 = vsub.s32 1, %v306
  %v308 = vrot.slane %v40, %v307
  %v309 = vmul.f32 %v292, %v296
  %v310 = vmul.f32 %v291, %v300
  %v311 = vmul.f32 %v290, %v304
  %v312 = vmul.f32 %v289, %v308
  %313 = vst [vmem:[#allocation2 + $0x20] sm:$0xff] %v309
  %314 = vst [vmem:[#allocation2 + $0x28] sm:$0xff] %v310
  %315 = vst [vmem:[#allocation2 + $0x30] sm:$0xff] %v311
  %316 = vst [vmem:[#allocation2 + $0x38] sm:$0xff] %v312
  %317 = vrot.lane.b32.xlu0 %v237, 15
  %v318 = vpop.permute.xlu0 %317
  %319 = vrot.lane.b32.xlu0 %v238, 15
  %v320 = vpop.permute.xlu0 %319
  %321 = vrot.lane.b32.xlu0 %v239, 15
  %v322 = vpop.permute.xlu0 %321
  %323 = vrot.lane.b32.xlu0 %v240, 15
  %v324 = vpop.permute.xlu0 %323
  %vm325 = vcmp.lt.s32.totalorder %v250, 15
  %v326 = vsel %vm325, %v322, %v324
  %v327 = vsel %vm325, %v320, %v322
  %v328 = vsel %vm325, %v318, %v320
  %v329 = vsel %vm325, %v324, %v318
  %v330 = vlaneseq
  %v331 = vshrl.u32 %v330, 7
  %v332 = vsub.s32 2, %v331
  %v333 = vrot.slane %v37, %v332
  %v334 = vlaneseq
  %v335 = vshrl.u32 %v334, 7
  %v336 = vsub.s32 2, %v335
  %v337 = vrot.slane %v38, %v336
  %v338 = vlaneseq
  %v339 = vshrl.u32 %v338, 7
  %v340 = vsub.s32 2, %v339
  %v341 = vrot.slane %v39, %v340
  %v342 = vlaneseq
  %v343 = vshrl.u32 %v342, 7
  %v344 = vsub.s32 2, %v343
  %v345 = vrot.slane %v40, %v344
  %v346 = vmul.f32 %v329, %v333
  %v347 = vmul.f32 %v328, %v337
  %v348 = vmul.f32 %v327, %v341
  %v349 = vmul.f32 %v326, %v345
  %350 = vst [vmem:[#allocation2 + $0x40] sm:$0xff] %v346
  %351 = vst [vmem:[#allocation2 + $0x48] sm:$0xff] %v347
  %352 = vst [vmem:[#allocation2 + $0x50] sm:$0xff] %v348
  %353 = vst [vmem:[#allocation2 + $0x58] sm:$0xff] %v349
  %354 = vrot.lane.b32.xlu0 %v237, 1
  %v355 = vpop.permute.xlu0 %354
  %356 = vrot.lane.b32.xlu0 %v238, 1
  %v357 = vpop.permute.xlu0 %356
  %358 = vrot.lane.b32.xlu0 %v239, 1
  %v359 = vpop.permute.xlu0 %358
  %360 = vrot.lane.b32.xlu0 %v240, 1
  %v361 = vpop.permute.xlu0 %360
  %vm362 = vcmp.lt.s32.totalorder %v250, 1
  %v363 = vsel %vm362, %v359, %v361
  %v364 = vsel %vm362, %v357, %v359
  %v365 = vsel %vm362, %v355, %v357
  %v366 = vsel %vm362, %v361, %v355
  %v367 = vlaneseq
  %v368 = vshrl.u32 %v367, 7
  %v369 = vsub.s32 3, %v368
  %v370 = vrot.slane %v37, %v369
  %v371 = vlaneseq
  %v372 = vshrl.u32 %v371, 7
  %v373 = vsub.s32 3, %v372
  %v374 = vrot.slane %v38, %v373
  %v375 = vlaneseq
  %v376 = vshrl.u32 %v375, 7
  %v377 = vsub.s32 3, %v376
  %v378 = vrot.slane %v39, %v377
  %v379 = vlaneseq
  %v380 = vshrl.u32 %v379, 7
  %v381 = vsub.s32 3, %v380
  %v382 = vrot.slane %v40, %v381
  %v383 = vmul.f32 %v366, %v370
  %v384 = vmul.f32 %v365, %v374
  %v385 = vmul.f32 %v364, %v378
  %v386 = vmul.f32 %v363, %v382
  %387 = vst [vmem:[#allocation2 + $0x60] sm:$0xff] %v383
  %388 = vst [vmem:[#allocation2 + $0x68] sm:$0xff] %v384
  %389 = vst [vmem:[#allocation2 + $0x70] sm:$0xff] %v385
  %390 = vst [vmem:[#allocation2 + $0x78] sm:$0xff] %v386
  %391 = vst [vmem:[#allocation2 + $0x80] sm:$0xff] %v237
  %392 = vst [vmem:[#allocation2 + $0x88] sm:$0xff] %v238
  %393 = vst [vmem:[#allocation2 + $0x90] sm:$0xff] %v239
  %394 = vst [vmem:[#allocation2 + $0x98] sm:$0xff] %v240
  %395 = vrot.lane.b32.xlu0 %v237, 127
  %v396 = vpop.permute.xlu0 %395
  %397 = vrot.lane.b32.xlu0 %v238, 127
  %v398 = vpop.permute.xlu0 %397
  %399 = vrot.lane.b32.xlu0 %v239, 127
  %v400 = vpop.permute.xlu0 %399
  %401 = vrot.lane.b32.xlu0 %v240, 127
  %v402 = vpop.permute.xlu0 %401
  %vm403 = vcmp.lt.s32.totalorder %v250, 127
  %v404 = vsel %vm403, %v400, %v402
  %v405 = vsel %vm403, %v398, %v400
  %v406 = vsel %vm403, %v396, %v398
  %v407 = vsel %vm403, %v402, %v396
  %v408 = vlaneseq
  %v409 = vshrl.u32 %v408, 7
  %v410 = vsub.s32 5, %v409
  %v411 = vrot.slane %v37, %v410
  %v412 = vlaneseq
  %v413 = vshrl.u32 %v412, 7
  %v414 = vsub.s32 5, %v413
  %v415 = vrot.slane %v38, %v414
  %v416 = vlaneseq
  %v417 = vshrl.u32 %v416, 7
  %v418 = vsub.s32 5, %v417
  %v419 = vrot.slane %v39, %v418
  %v420 = vlaneseq
  %v421 = vshrl.u32 %v420, 7
  %v422 = vsub.s32 5, %v421
  %v423 = vrot.slane %v40, %v422
  %v424 = vmul.f32 %v406, %v411
  %v425 = vmul.f32 %v405, %v415
  %v426 = vmul.f32 %v404, %v419
  %v427 = vmul.f32 %v407, %v423
  %428 = vst [vmem:[#allocation2 + $0xa0] sm:$0xff] %v424
  %429 = vst [vmem:[#allocation2 + $0xa8] sm:$0xff] %v425
  %430 = vst [vmem:[#allocation2 + $0xb0] sm:$0xff] %v426
  %431 = vst [vmem:[#allocation2 + $0xb8] sm:$0xff] %v427
  %432 = vrot.lane.b32.xlu0 %v237, 113
  %v433 = vpop.permute.xlu0 %432
  %434 = vrot.lane.b32.xlu0 %v238, 113
  %v435 = vpop.permute.xlu0 %434
  %436 = vrot.lane.b32.xlu0 %v239, 113
  %v437 = vpop.permute.xlu0 %436
  %438 = vrot.lane.b32.xlu0 %v240, 113
  %v439 = vpop.permute.xlu0 %438
  %vm440 = vcmp.lt.s32.totalorder %v250, 113
  %v441 = vsel %vm440, %v437, %v439
  %v442 = vsel %vm440, %v435, %v437
  %v443 = vsel %vm440, %v433, %v435
  %v444 = vsel %vm440, %v439, %v433
  %v445 = vlaneseq
  %v446 = vshrl.u32 %v445, 7
  %v447 = vsub.s32 6, %v446
  %v448 = vrot.slane %v37, %v447
  %v449 = vlaneseq
  %v450 = vshrl.u32 %v449, 7
  %v451 = vsub.s32 6, %v450
  %v452 = vrot.slane %v38, %v451
  %v453 = vlaneseq
  %v454 = vshrl.u32 %v453, 7
  %v455 = vsub.s32 6, %v454
  %v456 = vrot.slane %v39, %v455
  %v457 = vlaneseq
  %v458 = vshrl.u32 %v457, 7
  %v459 = vsub.s32 6, %v458
  %v460 = vrot.slane %v40, %v459
  %v461 = vmul.f32 %v443, %v448
  %v462 = vmul.f32 %v442, %v452
  %v463 = vmul.f32 %v441, %v456
  %v464 = vmul.f32 %v444, %v460
  %465 = vst [vmem:[#allocation2 + $0xc0] sm:$0xff] %v461
  %466 = vst [vmem:[#allocation2 + $0xc8] sm:$0xff] %v462
  %467 = vst [vmem:[#allocation2 + $0xd0] sm:$0xff] %v463
  %468 = vst [vmem:[#allocation2 + $0xd8] sm:$0xff] %v464
  %469 = vrot.lane.b32.xlu0 %v237, 112
  %v470 = vpop.permute.xlu0 %469
  %471 = vrot.lane.b32.xlu0 %v238, 112
  %v472 = vpop.permute.xlu0 %471
  %473 = vrot.lane.b32.xlu0 %v239, 112
  %v474 = vpop.permute.xlu0 %473
  %475 = vrot.lane.b32.xlu0 %v240, 112
  %v476 = vpop.permute.xlu0 %475
  %vm477 = vcmp.lt.s32.totalorder %v250, 112
  %v478 = vsel %vm477, %v474, %v476
  %v479 = vsel %vm477, %v472, %v474
  %v480 = vsel %vm477, %v470, %v472
  %v481 = vsel %vm477, %v476, %v470
  %v482 = vlaneseq
  %v483 = vshrl.u32 %v482, 7
  %v484 = vsub.s32 7, %v483
  %v485 = vrot.slane %v37, %v484
  %v486 = vlaneseq
  %v487 = vshrl.u32 %v486, 7
  %v488 = vsub.s32 7, %v487
  %v489 = vrot.slane %v38, %v488
  %v490 = vlaneseq
  %v491 = vshrl.u32 %v490, 7
  %v492 = vsub.s32 7, %v491
  %v493 = vrot.slane %v39, %v492
  %v494 = vlaneseq
  %v495 = vshrl.u32 %v494, 7
  %v496 = vsub.s32 7, %v495
  %v497 = vrot.slane %v40, %v496
  %v498 = vmul.f32 %v480, %v485
  %v499 = vmul.f32 %v479, %v489
  %v500 = vmul.f32 %v478, %v493
  %v501 = vmul.f32 %v481, %v497
  %502 = vst [vmem:[#allocation2 + $0xe0] sm:$0xff] %v498
  %503 = vst [vmem:[#allocation2 + $0xe8] sm:$0xff] %v499
  %504 = vst [vmem:[#allocation2 + $0xf0] sm:$0xff] %v500
  %505 = vst [vmem:[#allocation2 + $0xf8] sm:$0xff] %v501
  %506 = vrot.lane.b32.xlu0 %v237, 111
  %v507 = vpop.permute.xlu0 %506
  %508 = vrot.lane.b32.xlu0 %v238, 111
  %v509 = vpop.permute.xlu0 %508
  %510 = vrot.lane.b32.xlu0 %v239, 111
  %v511 = vpop.permute.xlu0 %510
  %512 = vrot.lane.b32.xlu0 %v240, 111
  %v513 = vpop.permute.xlu0 %512
  %vm514 = vcmp.lt.s32.totalorder %v250, 111
  %v515 = vsel %vm514, %v511, %v513
  %v516 = vsel %vm514, %v509, %v511
  %v517 = vsel %vm514, %v507, %v509
  %v518 = vsel %vm514, %v513, %v507
  %v519 = vlaneseq
  %v520 = vshrl.u32 %v519, 7
  %v521 = vsub.s32 0, %v520
  %v522 = vrot.slane %v41, %v521
  %v523 = vlaneseq
  %v524 = vshrl.u32 %v523, 7
  %v525 = vsub.s32 0, %v524
  %v526 = vrot.slane %v42, %v525
  %v527 = vlaneseq
  %v528 = vshrl.u32 %v527, 7
  %v529 = vsub.s32 0, %v528
  %v530 = vrot.slane %v43, %v529
  %v531 = vlaneseq
  %v532 = vshrl.u32 %v531, 7
  %v533 = vsub.s32 0, %v532
  %v534 = vrot.slane %v44, %v533
  %v535 = vmul.f32 %v517, %v522
  %v536 = vmul.f32 %v516, %v526
  %v537 = vmul.f32 %v515, %v530
  %v538 = vmul.f32 %v518, %v534
  %539 = vst [vmem:[#allocation2 + $0x100] sm:$0xff] %v535
  %540 = vst [vmem:[#allocation2 + $0x108] sm:$0xff] %v536
  %541 = vst [vmem:[#allocation2 + $0x110] sm:$0xff] %v537
  %542 = vst [vmem:[#allocation2 + $0x118] sm:$0xff] %v538
  %v543 = vld [vmem:[%s4] sm:$0xff]
  %v544 = vld [vmem:[#allocation2] sm:$0xff]
  %v545 = vld [vmem:[#allocation2 + $0x8] sm:$0xff]
  %v546 = vld [vmem:[#allocation2 + $0x10] sm:$0xff]
  %v547 = vld [vmem:[#allocation2 + $0x18] sm:$0xff]
  %v548 = vld [vmem:[#allocation2 + $0x20] sm:$0xff]
  %v549 = vld [vmem:[#allocation2 + $0x28] sm:$0xff]
  %v550 = vld [vmem:[#allocation2 + $0x30] sm:$0xff]
  %v551 = vld [vmem:[#allocation2 + $0x38] sm:$0xff]
  %v552 = vld [vmem:[#allocation2 + $0x40] sm:$0xff]
  %v553 = vld [vmem:[#allocation2 + $0x48] sm:$0xff]
  %v554 = vld [vmem:[#allocation2 + $0x50] sm:$0xff]
  %v555 = vld [vmem:[#allocation2 + $0x58] sm:$0xff]
  %v556 = vld [vmem:[#allocation2 + $0x60] sm:$0xff]
  %v557 = vld [vmem:[#allocation2 + $0x68] sm:$0xff]
  %v558 = vld [vmem:[#allocation2 + $0x70] sm:$0xff]
  %v559 = vld [vmem:[#allocation2 + $0x78] sm:$0xff]
  %v560 = vld [vmem:[#allocation2 + $0x80] sm:$0xff]
  %v561 = vld [vmem:[#allocation2 + $0x88] sm:$0xff]
  %v562 = vld [vmem:[#allocation2 + $0x90] sm:$0xff]
  %v563 = vld [vmem:[#allocation2 + $0x98] sm:$0xff]
  %v564 = vld [vmem:[#allocation2 + $0xa0] sm:$0xff]
  %v565 = vld [vmem:[#allocation2 + $0xa8] sm:$0xff]
  %v566 = vld [vmem:[#allocation2 + $0xb0] sm:$0xff]
  %v567 = vld [vmem:[#allocation2 + $0xb8] sm:$0xff]
  %v568 = vld [vmem:[#allocation2 + $0xc0] sm:$0xff]
  %v569 = vld [vmem:[#allocation2 + $0xc8] sm:$0xff]
  %v570 = vld [vmem:[#allocation2 + $0xd0] sm:$0xff]
  %v571 = vld [vmem:[#allocation2 + $0xd8] sm:$0xff]
  %v572 = vld [vmem:[#allocation2 + $0xe0] sm:$0xff]
  %v573 = vld [vmem:[#allocation2 + $0xe8] sm:$0xff]
  %v574 = vld [vmem:[#allocation2 + $0xf0] sm:$0xff]
  %v575 = vld [vmem:[#allocation2 + $0xf8] sm:$0xff]
  %v576 = vld [vmem:[#allocation2 + $0x100] sm:$0xff]
  %v577 = vld [vmem:[#allocation2 + $0x108] sm:$0xff]
  %v578 = vld [vmem:[#allocation2 + $0x110] sm:$0xff]
  %v579 = vld [vmem:[#allocation2 + $0x118] sm:$0xff]
  %v580 = vld [vmem:[%s5] sm:$0xff]
  %582 = vset.pattern.permute.xlu0 0
  %583 = vperm.xlu0 %582, %v580
  %v584 = vpop.permute.xlu0 %583
  %vm586 = vcmask 588800
  %v588 = vsel %vm586, %v543, 0
  %590 = vmatprep.subr.mxu0 0.0
  %591 = vmatpush1.msra.mxu0 0.0
  %592 = vmatprep.subr.mxu0 0.0
  %593 = vmatpush1.msra.mxu0 0.0
  %594 = vmatprep.subr.mxu0 0.0
  %595 = vmatpush1.msra.mxu0 0.0
  %596 = vmatprep.subr.mxu0 0.0
  %597 = vmatpush1.msra.mxu0 0.0
  %598 = vmatprep.subr.mxu0 0.0
  %599 = vmatpush1.msra.mxu0 0.0
  %600 = vmatprep.subr.mxu0 0.0
  %601 = vmatpush1.msra.mxu0 0.0
  %602 = vmatprep.subr.mxu0 0.0
  %603 = vmatpush1.msra.mxu0 0.0
  %604 = vmatprep.subr.mxu0 %v577
  %605 = vmatpush1.msra.mxu0 %v576
  %606 = vmatprep.subr.mxu0 %v573
  %607 = vmatpush1.msra.mxu0 %v572
  %608 = vmatprep.subr.mxu0 %v569
  %609 = vmatpush1.msra.mxu0 %v568
  %610 = vmatprep.subr.mxu0 %v565
  %611 = vmatpush1.msra.mxu0 %v564
  %612 = vmatprep.subr.mxu0 %v561
  %613 = vmatpush1.msra.mxu0 %v560
  %614 = vmatprep.subr.mxu0 %v557
  %615 = vmatpush1.msra.mxu0 %v556
  %616 = vmatprep.subr.mxu0 %v553
  %617 = vmatpush1.msra.mxu0 %v552
  %618 = vmatprep.subr.mxu0 %v549
  %619 = vmatpush1.msra.mxu0 %v548
  %620 = vmatprep.subr.mxu0 %v545
  %621 = vmatpush1.msra.mxu0 %v544
  %622 = vmatprep.subr.mxu0 0.0
  %623 = vmatpush2.msra.mxu0 0.0
  %624 = vmatprep.subr.mxu0 0.0
  %625 = vmatpush2.msra.mxu0 0.0
  %626 = vmatprep.subr.mxu0 0.0
  %627 = vmatpush2.msra.mxu0 0.0
  %628 = vmatprep.subr.mxu0 0.0
  %629 = vmatpush2.msra.mxu0 0.0
  %630 = vmatprep.subr.mxu0 0.0
  %631 = vmatpush2.msra.mxu0 0.0
  %632 = vmatprep.subr.mxu0 0.0
  %633 = vmatpush2.msra.mxu0 0.0
  %634 = vmatprep.subr.mxu0 0.0
  %635 = vmatpush2.msra.mxu0 0.0
  %636 = vmatprep.subr.mxu0 0.0
  %637 = vmatpush2.msra.mxu0 0.0
  %638 = vmatprep.subr.mxu0 0.0
  %639 = vmatpush2.msra.mxu0 0.0
  %640 = vmatprep.subr.mxu0 0.0
  %641 = vmatpush2.msra.mxu0 0.0
  %642 = vmatprep.subr.mxu0 0.0
  %643 = vmatpush2.msra.mxu0 0.0
  %644 = vmatprep.subr.mxu0 0.0
  %645 = vmatpush2.msra.mxu0 0.0
  %646 = vmatprep.subr.mxu0 0.0
  %647 = vmatpush2.msra.mxu0 0.0
  %648 = vmatprep.subr.mxu0 0.0
  %649 = vmatpush2.msra.mxu0 0.0
  %650 = vmatprep.subr.mxu0 0.0
  %651 = vmatpush2.msra.mxu0 0.0
  %652 = vmatprep.subr.mxu0 0.0
  %653 = vmatpush2.msra.mxu0 0.0
  %654 = vmatprep.mubr.f32.mxu0 0.0
  %655 = vmatmul.mubr.f32.gmra.mxu0 %v588
  %v656 = vpop.f32.mrf.mxu0
  %v657 = vadd.f32 %v584, %v656
  %v658 = vpop.f32.mrf.mxu0
  %v659 = vadd.f32 %v584, %v658
  %660 = vdwg.mxu0
  %661 = vmatprep.subr.mxu0 0.0
  %662 = vmatpush1.msra.mxu0 0.0
  %663 = vmatprep.subr.mxu0 0.0
  %664 = vmatpush1.msra.mxu0 0.0
  %665 = vmatprep.subr.mxu0 0.0
  %666 = vmatpush1.msra.mxu0 0.0
  %667 = vmatprep.subr.mxu0 0.0
  %668 = vmatpush1.msra.mxu0 0.0
  %669 = vmatprep.subr.mxu0 0.0
  %670 = vmatpush1.msra.mxu0 0.0
  %671 = vmatprep.subr.mxu0 0.0
  %672 = vmatpush1.msra.mxu0 0.0
  %673 = vmatprep.subr.mxu0 0.0
  %674 = vmatpush1.msra.mxu0 0.0
  %675 = vmatprep.subr.mxu0 %v579
  %676 = vmatpush1.msra.mxu0 %v578
  %677 = vmatprep.subr.mxu0 %v575
  %678 = vmatpush1.msra.mxu0 %v574
  %679 = vmatprep.subr.mxu0 %v571
  %680 = vmatpush1.msra.mxu0 %v570
  %681 = vmatprep.subr.mxu0 %v567
  %682 = vmatpush1.msra.mxu0 %v566
  %683 = vmatprep.subr.mxu0 %v563
  %684 = vmatpush1.msra.mxu0 %v562
  %685 = vmatprep.subr.mxu0 %v559
  %686 = vmatpush1.msra.mxu0 %v558
  %687 = vmatprep.subr.mxu0 %v555
  %688 = vmatpush1.msra.mxu0 %v554
  %689 = vmatprep.subr.mxu0 %v551
  %690 = vmatpush1.msra.mxu0 %v550
  %691 = vmatprep.subr.mxu0 %v547
  %692 = vmatpush1.msra.mxu0 %v546
  %693 = vmatprep.subr.mxu0 0.0
  %694 = vmatpush2.msra.mxu0 0.0
  %695 = vmatprep.subr.mxu0 0.0
  %696 = vmatpush2.msra.mxu0 0.0
  %697 = vmatprep.subr.mxu0 0.0
  %698 = vmatpush2.msra.mxu0 0.0
  %699 = vmatprep.subr.mxu0 0.0
  %700 = vmatpush2.msra.mxu0 0.0
  %701 = vmatprep.subr.mxu0 0.0
  %702 = vmatpush2.msra.mxu0 0.0
  %703 = vmatprep.subr.mxu0 0.0
  %704 = vmatpush2.msra.mxu0 0.0
  %705 = vmatprep.subr.mxu0 0.0
  %706 = vmatpush2.msra.mxu0 0.0
  %707 = vmatprep.subr.mxu0 0.0
  %708 = vmatpush2.msra.mxu0 0.0
  %709 = vmatprep.subr.mxu0 0.0
  %710 = vmatpush2.msra.mxu0 0.0
  %711 = vmatprep.subr.mxu0 0.0
  %712 = vmatpush2.msra.mxu0 0.0
  %713 = vmatprep.subr.mxu0 0.0
  %714 = vmatpush2.msra.mxu0 0.0
  %715 = vmatprep.subr.mxu0 0.0
  %716 = vmatpush2.msra.mxu0 0.0
  %717 = vmatprep.subr.mxu0 0.0
  %718 = vmatpush2.msra.mxu0 0.0
  %719 = vmatprep.subr.mxu0 0.0
  %720 = vmatpush2.msra.mxu0 0.0
  %721 = vmatprep.subr.mxu0 0.0
  %722 = vmatpush2.msra.mxu0 0.0
  %723 = vmatprep.subr.mxu0 0.0
  %724 = vmatpush2.msra.mxu0 0.0
  %725 = vmatprep.mubr.f32.mxu0 0.0
  %726 = vmatmul.mubr.f32.gmra.mxu0 %v588
  %v727 = vpop.f32.mrf.mxu0
  %v728 = vadd.f32 %v584, %v727
  %v729 = vpop.f32.mrf.mxu0
  %v730 = vadd.f32 %v584, %v729
  %731 = vdwg.mxu0
  %v732 = vmul.f32 %v657, 0.5
  %v733 = vmul.f32 %v659, 0.5
  %v734 = vmul.f32 %v728, 0.5
  %v735 = vmul.f32 %v730, 0.5
  %v736 = vmul.f32 %v657, 0.70710677
  %v737 = vmul.f32 %v659, 0.70710677
  %v738 = vmul.f32 %v728, 0.70710677
  %v739 = vmul.f32 %v730, 0.70710677
  %v740 = verf.f32.pop %v736
  %v741 = verf.f32.pop %v737
  %v742 = verf.f32.pop %v738
  %v743 = verf.f32.pop %v739
  %v744 = vadd.f32 %v740, 1.0
  %v745 = vadd.f32 %v741, 1.0
  %v746 = vadd.f32 %v742, 1.0
  %v747 = vadd.f32 %v743, 1.0
  %v748 = vmul.f32 %v732, %v744
  %v749 = vmul.f32 %v733, %v745
  %v750 = vmul.f32 %v734, %v746
  %v751 = vmul.f32 %v735, %v747
  %752 = vrot.lane.b32.xlu0 %v748, 17
  %v753 = vpop.permute.xlu0 %752
  %754 = vrot.lane.b32.xlu0 %v749, 17
  %v755 = vpop.permute.xlu0 %754
  %756 = vrot.lane.b32.xlu0 %v750, 17
  %v757 = vpop.permute.xlu0 %756
  %758 = vrot.lane.b32.xlu0 %v751, 17
  %v759 = vpop.permute.xlu0 %758
  %v760 = vsel %vm251, %v757, %v759
  %v761 = vsel %vm251, %v755, %v757
  %v762 = vsel %vm251, %v753, %v755
  %v763 = vsel %vm251, %v759, %v753
  %v764 = vmul.f32 %v763, %v259
  %v765 = vmul.f32 %v762, %v263
  %v766 = vmul.f32 %v761, %v267
  %v767 = vmul.f32 %v760, %v271
  %768 = vst [vmem:[#allocation2] sm:$0xff] %v764
  %769 = vst [vmem:[#allocation2 + $0x8] sm:$0xff] %v765
  %770 = vst [vmem:[#allocation2 + $0x10] sm:$0xff] %v766
  %771 = vst [vmem:[#allocation2 + $0x18] sm:$0xff] %v767
  %772 = vrot.lane.b32.xlu0 %v748, 16
  %v773 = vpop.permute.xlu0 %772
  %774 = vrot.lane.b32.xlu0 %v749, 16
  %v775 = vpop.permute.xlu0 %774
  %776 = vrot.lane.b32.xlu0 %v750, 16
  %v777 = vpop.permute.xlu0 %776
  %778 = vrot.lane.b32.xlu0 %v751, 16
  %v779 = vpop.permute.xlu0 %778
  %v780 = vsel %vm288, %v777, %v779
  %v781 = vsel %vm288, %v775, %v777
  %v782 = vsel %vm288, %v773, %v775
  %v783 = vsel %vm288, %v779, %v773
  %v784 = vmul.f32 %v783, %v296
  %v785 = vmul.f32 %v782, %v300
  %v786 = vmul.f32 %v781, %v304
  %v787 = vmul.f32 %v780, %v308
  %788 = vst [vmem:[#allocation2 + $0x20] sm:$0xff] %v784
  %789 = vst [vmem:[#allocation2 + $0x28] sm:$0xff] %v785
  %790 = vst [vmem:[#allocation2 + $0x30] sm:$0xff] %v786
  %791 = vst [vmem:[#allocation2 + $0x38] sm:$0xff] %v787
  %792 = vrot.lane.b32.xlu0 %v748, 15
  %v793 = vpop.permute.xlu0 %792
  %794 = vrot.lane.b32.xlu0 %v749, 15
  %v795 = vpop.permute.xlu0 %794
  %796 = vrot.lane.b32.xlu0 %v750, 15
  %v797 = vpop.permute.xlu0 %796
  %798 = vrot.lane.b32.xlu0 %v751, 15
  %v799 = vpop.permute.xlu0 %798
  %v800 = vsel %vm325, %v797, %v799
  %v801 = vsel %vm325, %v795, %v797
  %v802 = vsel %vm325, %v793, %v795
  %v803 = vsel %vm325, %v799, %v793
  %v804 = vmul.f32 %v803, %v333
  %v805 = vmul.f32 %v802, %v337
  %v806 = vmul.f32 %v801, %v341
  %v807 = vmul.f32 %v800, %v345
  %808 = vst [vmem:[#allocation2 + $0x40] sm:$0xff] %v804
  %809 = vst [vmem:[#allocation2 + $0x48] sm:$0xff] %v805
  %810 = vst [vmem:[#allocation2 + $0x50] sm:$0xff] %v806
  %811 = vst [vmem:[#allocation2 + $0x58] sm:$0xff] %v807
  %812 = vrot.lane.b32.xlu0 %v748, 1
  %v813 = vpop.permute.xlu0 %812
  %814 = vrot.lane.b32.xlu0 %v749, 1
  %v815 = vpop.permute.xlu0 %814
  %816 = vrot.lane.b32.xlu0 %v750, 1
  %v817 = vpop.permute.xlu0 %816
  %818 = vrot.lane.b32.xlu0 %v751, 1
  %v819 = vpop.permute.xlu0 %818
  %v820 = vsel %vm362, %v817, %v819
  %v821 = vsel %vm362, %v815, %v817
  %v822 = vsel %vm362, %v813, %v815
  %v823 = vsel %vm362, %v819, %v813
  %v824 = vmul.f32 %v823, %v370
  %v825 = vmul.f32 %v822, %v374
  %v826 = vmul.f32 %v821, %v378
  %v827 = vmul.f32 %v820, %v382
  %828 = vst [vmem:[#allocation2 + $0x60] sm:$0xff] %v824
  %829 = vst [vmem:[#allocation2 + $0x68] sm:$0xff] %v825
  %830 = vst [vmem:[#allocation2 + $0x70] sm:$0xff] %v826
  %831 = vst [vmem:[#allocation2 + $0x78] sm:$0xff] %v827
  %832 = vst [vmem:[#allocation2 + $0x80] sm:$0xff] %v748
  %833 = vst [vmem:[#allocation2 + $0x88] sm:$0xff] %v749
  %834 = vst [vmem:[#allocation2 + $0x90] sm:$0xff] %v750
  %835 = vst [vmem:[#allocation2 + $0x98] sm:$0xff] %v751
  %836 = vrot.lane.b32.xlu0 %v748, 127
  %v837 = vpop.permute.xlu0 %836
  %838 = vrot.lane.b32.xlu0 %v749, 127
  %v839 = vpop.permute.xlu0 %838
  %840 = vrot.lane.b32.xlu0 %v750, 127
  %v841 = vpop.permute.xlu0 %840
  %842 = vrot.lane.b32.xlu0 %v751, 127
  %v843 = vpop.permute.xlu0 %842
  %v844 = vsel %vm403, %v841, %v843
  %v845 = vsel %vm403, %v839, %v841
  %v846 = vsel %vm403, %v837, %v839
  %v847 = vsel %vm403, %v843, %v837
  %v848 = vmul.f32 %v846, %v411
  %v849 = vmul.f32 %v845, %v415
  %v850 = vmul.f32 %v844, %v419
  %v851 = vmul.f32 %v847, %v423
  %852 = vst [vmem:[#allocation2 + $0xa0] sm:$0xff] %v848
  %853 = vst [vmem:[#allocation2 + $0xa8] sm:$0xff] %v849
  %854 = vst [vmem:[#allocation2 + $0xb0] sm:$0xff] %v850
  %855 = vst [vmem:[#allocation2 + $0xb8] sm:$0xff] %v851
  %856 = vrot.lane.b32.xlu0 %v748, 113
  %v857 = vpop.permute.xlu0 %856
  %858 = vrot.lane.b32.xlu0 %v749, 113
  %v859 = vpop.permute.xlu0 %858
  %860 = vrot.lane.b32.xlu0 %v750, 113
  %v861 = vpop.permute.xlu0 %860
  %862 = vrot.lane.b32.xlu0 %v751, 113
  %v863 = vpop.permute.xlu0 %862
  %v864 = vsel %vm440, %v861, %v863
  %v865 = vsel %vm440, %v859, %v861
  %v866 = vsel %vm440, %v857, %v859
  %v867 = vsel %vm440, %v863, %v857
  %v868 = vmul.f32 %v866, %v448
  %v869 = vmul.f32 %v865, %v452
  %v870 = vmul.f32 %v864, %v456
  %v871 = vmul.f32 %v867, %v460
  %872 = vst [vmem:[#allocation2 + $0xc0] sm:$0xff] %v868
  %873 = vst [vmem:[#allocation2 + $0xc8] sm:$0xff] %v869
  %874 = vst [vmem:[#allocation2 + $0xd0] sm:$0xff] %v870
  %875 = vst [vmem:[#allocation2 + $0xd8] sm:$0xff] %v871
  %876 = vrot.lane.b32.xlu0 %v748, 112
  %v877 = vpop.permute.xlu0 %876
  %878 = vrot.lane.b32.xlu0 %v749, 112
  %v879 = vpop.permute.xlu0 %878
  %880 = vrot.lane.b32.xlu0 %v750, 112
  %v881 = vpop.permute.xlu0 %880
  %882 = vrot.lane.b32.xlu0 %v751, 112
  %v883 = vpop.permute.xlu0 %882
  %v884 = vsel %vm477, %v881, %v883
  %v885 = vsel %vm477, %v879, %v881
  %v886 = vsel %vm477, %v877, %v879
  %v887 = vsel %vm477, %v883, %v877
  %v888 = vmul.f32 %v886, %v485
  %v889 = vmul.f32 %v885, %v489
  %v890 = vmul.f32 %v884, %v493
  %v891 = vmul.f32 %v887, %v497
  %892 = vst [vmem:[#allocation2 + $0xe0] sm:$0xff] %v888
  %893 = vst [vmem:[#allocation2 + $0xe8] sm:$0xff] %v889
  %894 = vst [vmem:[#allocation2 + $0xf0] sm:$0xff] %v890
  %895 = vst [vmem:[#allocation2 + $0xf8] sm:$0xff] %v891
  %896 = vrot.lane.b32.xlu0 %v748, 111
  %v897 = vpop.permute.xlu0 %896
  %898 = vrot.lane.b32.xlu0 %v749, 111
  %v899 = vpop.permute.xlu0 %898
  %900 = vrot.lane.b32.xlu0 %v750, 111
  %v901 = vpop.permute.xlu0 %900
  %902 = vrot.lane.b32.xlu0 %v751, 111
  %v903 = vpop.permute.xlu0 %902
  %v904 = vsel %vm514, %v901, %v903
  %v905 = vsel %vm514, %v899, %v901
  %v906 = vsel %vm514, %v897, %v899
  %v907 = vsel %vm514, %v903, %v897
  %v908 = vmul.f32 %v906, %v522
  %v909 = vmul.f32 %v905, %v526
  %v910 = vmul.f32 %v904, %v530
  %v911 = vmul.f32 %v907, %v534
  %912 = vst [vmem:[#allocation2 + $0x100] sm:$0xff] %v908
  %913 = vst [vmem:[#allocation2 + $0x108] sm:$0xff] %v909
  %914 = vst [vmem:[#allocation2 + $0x110] sm:$0xff] %v910
  %915 = vst [vmem:[#allocation2 + $0x118] sm:$0xff] %v911
  %v916 = vld [vmem:[%s6] sm:$0xff]
  %v917 = vld [vmem:[#allocation2] sm:$0xff]
  %v918 = vld [vmem:[#allocation2 + $0x8] sm:$0xff]
  %v919 = vld [vmem:[#allocation2 + $0x10] sm:$0xff]
  %v920 = vld [vmem:[#allocation2 + $0x18] sm:$0xff]
  %v921 = vld [vmem:[#allocation2 + $0x20] sm:$0xff]
  %v922 = vld [vmem:[#allocation2 + $0x28] sm:$0xff]
  %v923 = vld [vmem:[#allocation2 + $0x30] sm:$0xff]
  %v924 = vld [vmem:[#allocation2 + $0x38] sm:$0xff]
  %v925 = vld [vmem:[#allocation2 + $0x40] sm:$0xff]
  %v926 = vld [vmem:[#allocation2 + $0x48] sm:$0xff]
  %v927 = vld [vmem:[#allocation2 + $0x50] sm:$0xff]
  %v928 = vld [vmem:[#allocation2 + $0x58] sm:$0xff]
  %v929 = vld [vmem:[#allocation2 + $0x60] sm:$0xff]
  %v930 = vld [vmem:[#allocation2 + $0x68] sm:$0xff]
  %v931 = vld [vmem:[#allocation2 + $0x70] sm:$0xff]
  %v932 = vld [vmem:[#allocation2 + $0x78] sm:$0xff]
  %v933 = vld [vmem:[#allocation2 + $0x80] sm:$0xff]
  %v934 = vld [vmem:[#allocation2 + $0x88] sm:$0xff]
  %v935 = vld [vmem:[#allocation2 + $0x90] sm:$0xff]
  %v936 = vld [vmem:[#allocation2 + $0x98] sm:$0xff]
  %v937 = vld [vmem:[#allocation2 + $0xa0] sm:$0xff]
  %v938 = vld [vmem:[#allocation2 + $0xa8] sm:$0xff]
  %v939 = vld [vmem:[#allocation2 + $0xb0] sm:$0xff]
  %v940 = vld [vmem:[#allocation2 + $0xb8] sm:$0xff]
  %v941 = vld [vmem:[#allocation2 + $0xc0] sm:$0xff]
  %v942 = vld [vmem:[#allocation2 + $0xc8] sm:$0xff]
  %v943 = vld [vmem:[#allocation2 + $0xd0] sm:$0xff]
  %v944 = vld [vmem:[#allocation2 + $0xd8] sm:$0xff]
  %v945 = vld [vmem:[#allocation2 + $0xe0] sm:$0xff]
  %v946 = vld [vmem:[#allocation2 + $0xe8] sm:$0xff]
  %v947 = vld [vmem:[#allocation2 + $0xf0] sm:$0xff]
  %v948 = vld [vmem:[#allocation2 + $0xf8] sm:$0xff]
  %v949 = vld [vmem:[#allocation2 + $0x100] sm:$0xff]
  %v950 = vld [vmem:[#allocation2 + $0x108] sm:$0xff]
  %v951 = vld [vmem:[#allocation2 + $0x110] sm:$0xff]
  %v952 = vld [vmem:[#allocation2 + $0x118] sm:$0xff]
  %v953 = vld [vmem:[%s7] sm:$0xff]
  %955 = vset.pattern.permute.xlu0 0
  %956 = vperm.xlu0 %955, %v953
  %v957 = vpop.permute.xlu0 %956
  %v960 = vsel %vm586, %v916, 0
  %962 = vmatprep.subr.mxu0 0.0
  %963 = vmatpush1.msra.mxu0 0.0
  %964 = vmatprep.subr.mxu0 0.0
  %965 = vmatpush1.msra.mxu0 0.0
  %966 = vmatprep.subr.mxu0 0.0
  %967 = vmatpush1.msra.mxu0 0.0
  %968 = vmatprep.subr.mxu0 0.0
  %969 = vmatpush1.msra.mxu0 0.0
  %970 = vmatprep.subr.mxu0 0.0
  %971 = vmatpush1.msra.mxu0 0.0
  %972 = vmatprep.subr.mxu0 0.0
  %973 = vmatpush1.msra.mxu0 0.0
  %974 = vmatprep.subr.mxu0 0.0
  %975 = vmatpush1.msra.mxu0 0.0
  %976 = vmatprep.subr.mxu0 %v950
  %977 = vmatpush1.msra.mxu0 %v949
  %978 = vmatprep.subr.mxu0 %v946
  %979 = vmatpush1.msra.mxu0 %v945
  %980 = vmatprep.subr.mxu0 %v942
  %981 = vmatpush1.msra.mxu0 %v941
  %982 = vmatprep.subr.mxu0 %v938
  %983 = vmatpush1.msra.mxu0 %v937
  %984 = vmatprep.subr.mxu0 %v934
  %985 = vmatpush1.msra.mxu0 %v933
  %986 = vmatprep.subr.mxu0 %v930
  %987 = vmatpush1.msra.mxu0 %v929
  %988 = vmatprep.subr.mxu0 %v926
  %989 = vmatpush1.msra.mxu0 %v925
  %990 = vmatprep.subr.mxu0 %v922
  %991 = vmatpush1.msra.mxu0 %v921
  %992 = vmatprep.subr.mxu0 %v918
  %993 = vmatpush1.msra.mxu0 %v917
  %994 = vmatprep.subr.mxu0 0.0
  %995 = vmatpush2.msra.mxu0 0.0
  %996 = vmatprep.subr.mxu0 0.0
  %997 = vmatpush2.msra.mxu0 0.0
  %998 = vmatprep.subr.mxu0 0.0
  %999 = vmatpush2.msra.mxu0 0.0
  %1000 = vmatprep.subr.mxu0 0.0
  %1001 = vmatpush2.msra.mxu0 0.0
  %1002 = vmatprep.subr.mxu0 0.0
  %1003 = vmatpush2.msra.mxu0 0.0
  %1004 = vmatprep.subr.mxu0 0.0
  %1005 = vmatpush2.msra.mxu0 0.0
  %1006 = vmatprep.subr.mxu0 0.0
  %1007 = vmatpush2.msra.mxu0 0.0
  %1008 = vmatprep.subr.mxu0 0.0
  %1009 = vmatpush2.msra.mxu0 0.0
  %1010 = vmatprep.subr.mxu0 0.0
  %1011 = vmatpush2.msra.mxu0 0.0
  %1012 = vmatprep.subr.mxu0 0.0
  %1013 = vmatpush2.msra.mxu0 0.0
  %1014 = vmatprep.subr.mxu0 0.0
  %1015 = vmatpush2.msra.mxu0 0.0
  %1016 = vmatprep.subr.mxu0 0.0
  %1017 = vmatpush2.msra.mxu0 0.0
  %1018 = vmatprep.subr.mxu0 0.0
  %1019 = vmatpush2.msra.mxu0 0.0
  %1020 = vmatprep.subr.mxu0 0.0
  %1021 = vmatpush2.msra.mxu0 0.0
  %1022 = vmatprep.subr.mxu0 0.0
  %1023 = vmatpush2.msra.mxu0 0.0
  %1024 = vmatprep.subr.mxu0 0.0
  %1025 = vmatpush2.msra.mxu0 0.0
  %1026 = vmatprep.mubr.f32.mxu0 0.0
  %1027 = vmatmul.mubr.f32.gmra.mxu0 %v960
  %v1028 = vpop.f32.mrf.mxu0
  %v1029 = vadd.f32 %v957, %v1028
  %v1030 = vpop.f32.mrf.mxu0
  %v1031 = vadd.f32 %v957, %v1030
  %1032 = vdwg.mxu0
  %1033 = vmatprep.subr.mxu0 0.0
  %1034 = vmatpush1.msra.mxu0 0.0
  %1035 = vmatprep.subr.mxu0 0.0
  %1036 = vmatpush1.msra.mxu0 0.0
  %1037 = vmatprep.subr.mxu0 0.0
  %1038 = vmatpush1.msra.mxu0 0.0
  %1039 = vmatprep.subr.mxu0 0.0
  %1040 = vmatpush1.msra.mxu0 0.0
  %1041 = vmatprep.subr.mxu0 0.0
  %1042 = vmatpush1.msra.mxu0 0.0
  %1043 = vmatprep.subr.mxu0 0.0
  %1044 = vmatpush1.msra.mxu0 0.0
  %1045 = vmatprep.subr.mxu0 0.0
  %1046 = vmatpush1.msra.mxu0 0.0
  %1047 = vmatprep.subr.mxu0 %v952
  %1048 = vmatpush1.msra.mxu0 %v951
  %1049 = vmatprep.subr.mxu0 %v948
  %1050 = vmatpush1.msra.mxu0 %v947
  %1051 = vmatprep.subr.mxu0 %v944
  %1052 = vmatpush1.msra.mxu0 %v943
  %1053 = vmatprep.subr.mxu0 %v940
  %1054 = vmatpush1.msra.mxu0 %v939
  %1055 = vmatprep.subr.mxu0 %v936
  %1056 = vmatpush1.msra.mxu0 %v935
  %1057 = vmatprep.subr.mxu0 %v932
  %1058 = vmatpush1.msra.mxu0 %v931
  %1059 = vmatprep.subr.mxu0 %v928
  %1060 = vmatpush1.msra.mxu0 %v927
  %1061 = vmatprep.subr.mxu0 %v924
  %1062 = vmatpush1.msra.mxu0 %v923
  %1063 = vmatprep.subr.mxu0 %v920
  %1064 = vmatpush1.msra.mxu0 %v919
  %1065 = vmatprep.subr.mxu0 0.0
  %1066 = vmatpush2.msra.mxu0 0.0
  %1067 = vmatprep.subr.mxu0 0.0
  %1068 = vmatpush2.msra.mxu0 0.0
  %1069 = vmatprep.subr.mxu0 0.0
  %1070 = vmatpush2.msra.mxu0 0.0
  %1071 = vmatprep.subr.mxu0 0.0
  %1072 = vmatpush2.msra.mxu0 0.0
  %1073 = vmatprep.subr.mxu0 0.0
  %1074 = vmatpush2.msra.mxu0 0.0
  %1075 = vmatprep.subr.mxu0 0.0
  %1076 = vmatpush2.msra.mxu0 0.0
  %1077 = vmatprep.subr.mxu0 0.0
  %1078 = vmatpush2.msra.mxu0 0.0
  %1079 = vmatprep.subr.mxu0 0.0
  %1080 = vmatpush2.msra.mxu0 0.0
  %1081 = vmatprep.subr.mxu0 0.0
  %1082 = vmatpush2.msra.mxu0 0.0
  %1083 = vmatprep.subr.mxu0 0.0
  %1084 = vmatpush2.msra.mxu0 0.0
  %1085 = vmatprep.subr.mxu0 0.0
  %1086 = vmatpush2.msra.mxu0 0.0
  %1087 = vmatprep.subr.mxu0 0.0
  %1088 = vmatpush2.msra.mxu0 0.0
  %1089 = vmatprep.subr.mxu0 0.0
  %1090 = vmatpush2.msra.mxu0 0.0
  %1091 = vmatprep.subr.mxu0 0.0
  %1092 = vmatpush2.msra.mxu0 0.0
  %1093 = vmatprep.subr.mxu0 0.0
  %1094 = vmatpush2.msra.mxu0 0.0
  %1095 = vmatprep.subr.mxu0 0.0
  %1096 = vmatpush2.msra.mxu0 0.0
  %1097 = vmatprep.mubr.f32.mxu0 0.0
  %1098 = vmatmul.mubr.f32.gmra.mxu0 %v960
  %v1099 = vpop.f32.mrf.mxu0
  %v1100 = vadd.f32 %v957, %v1099
  %v1101 = vpop.f32.mrf.mxu0
  %v1102 = vadd.f32 %v957, %v1101
  %1103 = vdwg.mxu0
  %v1104 = vmul.f32 %v1029, 0.5
  %v1105 = vmul.f32 %v1031, 0.5
  %v1106 = vmul.f32 %v1100, 0.5
  %v1107 = vmul.f32 %v1102, 0.5
  %v1108 = vmul.f32 %v1029, 0.70710677
  %v1109 = vmul.f32 %v1031, 0.70710677
  %v1110 = vmul.f32 %v1100, 0.70710677
  %v1111 = vmul.f32 %v1102, 0.70710677
  %v1112 = verf.f32.pop %v1108
  %v1113 = verf.f32.pop %v1109
  %v1114 = verf.f32.pop %v1110
  %v1115 = verf.f32.pop %v1111
  %v1116 = vadd.f32 %v1112, 1.0
  %v1117 = vadd.f32 %v1113, 1.0
  %v1118 = vadd.f32 %v1114, 1.0
  %v1119 = vadd.f32 %v1115, 1.0
  %v1120 = vmul.f32 %v1104, %v1116
  %v1121 = vmul.f32 %v1105, %v1117
  %v1122 = vmul.f32 %v1106, %v1118
  %v1123 = vmul.f32 %v1107, %v1119
  %v1124 = vld [vmem:[%s8] sm:$0xf]
  %v1125 = vld [vmem:[%s9] sm:$0xf]
  %1127 = vset.pattern.permute.xlu0 0
  %1128 = vperm.xlu0 %1127, %v1125
  %v1129 = vpop.permute.xlu0 %1128
  %vm1131 = vcmask 64512
  %v1133 = vsel %vm1131, %v1124, 0
  %1135 = vmatprep.subr.mxu0 0.0
  %1136 = vmatpush1.msra.mxu0 0.0
  %1137 = vmatprep.subr.mxu0 0.0
  %1138 = vmatpush1.msra.mxu0 0.0
  %1139 = vmatprep.subr.mxu0 0.0
  %1140 = vmatpush1.msra.mxu0 0.0
  %1141 = vmatprep.subr.mxu0 0.0
  %1142 = vmatpush1.msra.mxu0 0.0
  %1143 = vmatprep.subr.mxu0 0.0
  %1144 = vmatpush1.msra.mxu0 0.0
  %1145 = vmatprep.subr.mxu0 0.0
  %1146 = vmatpush1.msra.mxu0 0.0
  %1147 = vmatprep.subr.mxu0 0.0
  %1148 = vmatpush1.msra.mxu0 0.0
  %1149 = vmatprep.subr.mxu0 0.0
  %1150 = vmatpush1.msra.mxu0 0.0
  %1151 = vmatprep.subr.mxu0 0.0
  %1152 = vmatpush1.msra.mxu0 0.0
  %1153 = vmatprep.subr.mxu0 0.0
  %1154 = vmatpush1.msra.mxu0 0.0
  %1155 = vmatprep.subr.mxu0 0.0
  %1156 = vmatpush1.msra.mxu0 0.0
  %1157 = vmatprep.subr.mxu0 0.0
  %1158 = vmatpush1.msra.mxu0 0.0
  %1159 = vmatprep.subr.mxu0 0.0
  %1160 = vmatpush1.msra.mxu0 0.0
  %1161 = vmatprep.subr.mxu0 0.0
  %1162 = vmatpush1.msra.mxu0 0.0
  %1163 = vmatprep.subr.mxu0 0.0
  %1164 = vmatpush1.msra.mxu0 0.0
  %1165 = vmatprep.subr.mxu0 %v1121
  %1166 = vmatpush1.msra.mxu0 %v1120
  %1167 = vmatprep.subr.mxu0 0.0
  %1168 = vmatpush2.msra.mxu0 0.0
  %1169 = vmatprep.subr.mxu0 0.0
  %1170 = vmatpush2.msra.mxu0 0.0
  %1171 = vmatprep.subr.mxu0 0.0
  %1172 = vmatpush2.msra.mxu0 0.0
  %1173 = vmatprep.subr.mxu0 0.0
  %1174 = vmatpush2.msra.mxu0 0.0
  %1175 = vmatprep.subr.mxu0 0.0
  %1176 = vmatpush2.msra.mxu0 0.0
  %1177 = vmatprep.subr.mxu0 0.0
  %1178 = vmatpush2.msra.mxu0 0.0
  %1179 = vmatprep.subr.mxu0 0.0
  %1180 = vmatpush2.msra.mxu0 0.0
  %1181 = vmatprep.subr.mxu0 0.0
  %1182 = vmatpush2.msra.mxu0 0.0
  %1183 = vmatprep.subr.mxu0 0.0
  %1184 = vmatpush2.msra.mxu0 0.0
  %1185 = vmatprep.subr.mxu0 0.0
  %1186 = vmatpush2.msra.mxu0 0.0
  %1187 = vmatprep.subr.mxu0 0.0
  %1188 = vmatpush2.msra.mxu0 0.0
  %1189 = vmatprep.subr.mxu0 0.0
  %1190 = vmatpush2.msra.mxu0 0.0
  %1191 = vmatprep.subr.mxu0 0.0
  %1192 = vmatpush2.msra.mxu0 0.0
  %1193 = vmatprep.subr.mxu0 0.0
  %1194 = vmatpush2.msra.mxu0 0.0
  %1195 = vmatprep.subr.mxu0 0.0
  %1196 = vmatpush2.msra.mxu0 0.0
  %1197 = vmatprep.subr.mxu0 0.0
  %1198 = vmatpush2.msra.mxu0 0.0
  %1199 = vmatprep.mubr.f32.mxu0 0.0
  %1200 = vmatmul.mubr.f32.gmra.mxu0 %v1133
  %v1201 = vpop.f32.mrf.mxu0
  %v1202 = vadd.f32 %v1129, %v1201
  %v1203 = vpop.f32.mrf.mxu0
  %v1204 = vadd.f32 %v1129, %v1203
  %1205 = vdwg.mxu0
  %1206 = vmatprep.subr.mxu0 0.0
  %1207 = vmatpush1.msra.mxu0 0.0
  %1208 = vmatprep.subr.mxu0 0.0
  %1209 = vmatpush1.msra.mxu0 0.0
  %1210 = vmatprep.subr.mxu0 0.0
  %1211 = vmatpush1.msra.mxu0 0.0
  %1212 = vmatprep.subr.mxu0 0.0
  %1213 = vmatpush1.msra.mxu0 0.0
  %1214 = vmatprep.subr.mxu0 0.0
  %1215 = vmatpush1.msra.mxu0 0.0
  %1216 = vmatprep.subr.mxu0 0.0
  %1217 = vmatpush1.msra.mxu0 0.0
  %1218 = vmatprep.subr.mxu0 0.0
  %1219 = vmatpush1.msra.mxu0 0.0
  %1220 = vmatprep.subr.mxu0 0.0
  %1221 = vmatpush1.msra.mxu0 0.0
  %1222 = vmatprep.subr.mxu0 0.0
  %1223 = vmatpush1.msra.mxu0 0.0
  %1224 = vmatprep.subr.mxu0 0.0
  %1225 = vmatpush1.msra.mxu0 0.0
  %1226 = vmatprep.subr.mxu0 0.0
  %1227 = vmatpush1.msra.mxu0 0.0
  %1228 = vmatprep.subr.mxu0 0.0
  %1229 = vmatpush1.msra.mxu0 0.0
  %1230 = vmatprep.subr.mxu0 0.0
  %1231 = vmatpush1.msra.mxu0 0.0
  %1232 = vmatprep.subr.mxu0 0.0
  %1233 = vmatpush1.msra.mxu0 0.0
  %1234 = vmatprep.subr.mxu0 0.0
  %1235 = vmatpush1.msra.mxu0 0.0
  %1236 = vmatprep.subr.mxu0 %v1123
  %1237 = vmatpush1.msra.mxu0 %v1122
  %1238 = vmatprep.subr.mxu0 0.0
  %1239 = vmatpush2.msra.mxu0 0.0
  %1240 = vmatprep.subr.mxu0 0.0
  %1241 = vmatpush2.msra.mxu0 0.0
  %1242 = vmatprep.subr.mxu0 0.0
  %1243 = vmatpush2.msra.mxu0 0.0
  %1244 = vmatprep.subr.mxu0 0.0
  %1245 = vmatpush2.msra.mxu0 0.0
  %1246 = vmatprep.subr.mxu0 0.0
  %1247 = vmatpush2.msra.mxu0 0.0
  %1248 = vmatprep.subr.mxu0 0.0
  %1249 = vmatpush2.msra.mxu0 0.0
  %1250 = vmatprep.subr.mxu0 0.0
  %1251 = vmatpush2.msra.mxu0 0.0
  %1252 = vmatprep.subr.mxu0 0.0
  %1253 = vmatpush2.msra.mxu0 0.0
  %1254 = vmatprep.subr.mxu0 0.0
  %1255 = vmatpush2.msra.mxu0 0.0
  %1256 = vmatprep.subr.mxu0 0.0
  %1257 = vmatpush2.msra.mxu0 0.0
  %1258 = vmatprep.subr.mxu0 0.0
  %1259 = vmatpush2.msra.mxu0 0.0
  %1260 = vmatprep.subr.mxu0 0.0
  %1261 = vmatpush2.msra.mxu0 0.0
  %1262 = vmatprep.subr.mxu0 0.0
  %1263 = vmatpush2.msra.mxu0 0.0
  %1264 = vmatprep.subr.mxu0 0.0
  %1265 = vmatpush2.msra.mxu0 0.0
  %1266 = vmatprep.subr.mxu0 0.0
  %1267 = vmatpush2.msra.mxu0 0.0
  %1268 = vmatprep.subr.mxu0 0.0
  %1269 = vmatpush2.msra.mxu0 0.0
  %1270 = vmatprep.mubr.f32.mxu0 0.0
  %1271 = vmatmul.mubr.f32.gmra.mxu0 %v1133
  %v1272 = vpop.f32.mrf.mxu0
  %v1273 = vadd.f32 %v1129, %v1272
  %v1274 = vpop.f32.mrf.mxu0
  %v1275 = vadd.f32 %v1129, %v1274
  %1276 = vdwg.mxu0
  %v1279 = vcombine.high %v35, %v35
  %v1280 = vcombine.high %v36, %v36
  %v1283 = vadd.f32 %v1202, %v35
  %v1284 = vadd.f32 %v1204, %v1279
  %v1285 = vadd.f32 %v1273, %v36
  %v1286 = vadd.f32 %v1275, %v1280
  %v1291 = vcombine.low %v1283, %v1284
  %v1292 = vcombine.low %v1285, %v1286
  %1295 = vst [vmem:[%s10] sm:$0xff] %v1291
  %1296 = vst [vmem:[%s10 + $0x8] sm:$0xff] %v1292
  // Predicated region
  $region42: #{block_forward.1} parent=0 // pred_check
    _
  $region43: #{block_forward.1} parent=0 // pred_check_branch
    %1298 = sbr.rel (0) target = $region45
  $region44: #{block_forward.1} parent=0 // pred_region
    _
  $region45: #{block_forward.1} parent=0 // pred_fallthru
    _
  // Predicated region
  $region46: #{block_forward.1} parent=0 // pred_check
    _
  $region47: #{block_forward.1} parent=0 // pred_check_branch
    %1300 = sbr.rel (0) target = $region49
  $region48: #{block_forward.1} parent=0 // pred_region
    _
  $region49: #{block_forward.1} parent=0 // pred_fallthru
    _

</llo_original>
